<compile_context>
chip_gen: v7x
topology: tpu7x:2x2x1
jax: 0.10.0
libtpu: 0.0.40
codegen_flags: <defaults>
</compile_context>

<pallas_src>
import functools
import math

import jax
import jax.numpy as jnp
from jax.experimental import pallas as pl
from jax.experimental.pallas import tpu as pltpu

# ---------------------------------------------------------------------------
# Small synthetic config (structure matches SiglipVisionConfig).
# ---------------------------------------------------------------------------
BATCH = 2
SEQ = 16
HIDDEN = 32
NUM_HEADS = 4
HEAD_DIM = HIDDEN // NUM_HEADS
INTERMEDIATE = 64
LN_EPS = 1e-6
SCALE = HEAD_DIM ** (-0.5)
TQ = 8          # q-tile rows per grid step (toy; >=256 at production shapes)

_SQRT_2_OVER_PI = math.sqrt(2.0 / math.pi)


def _gelu_tanh(x):
    # torch.nn.functional.gelu(..., approximate='tanh')
    return 0.5 * x * (1.0 + jnp.tanh(_SQRT_2_OVER_PI * (x + 0.044715 * x * x * x)))


def _layer_norm(x, w, b, eps):
    # One-pass variance (E[x^2] - E[x]^2): halves the cross-lane reductions.
    mu = jnp.mean(x, axis=-1, keepdims=True)
    ex2 = jnp.mean(x * x, axis=-1, keepdims=True)
    var = jnp.maximum(ex2 - mu * mu, 0.0)
    return (x - mu) * jax.lax.rsqrt(var + eps) * w + b


# ---------------------------------------------------------------------------
# Pallas kernel: one (batch, q-tile) grid step per invocation.
# ---------------------------------------------------------------------------
def siglip_encoder_layer_kernel(
    x_ref,       # (1, S, D)     f32   full sequence of batch b (constant over qi)
    wqkv_ref,    # (3, H, D, hd) bf16  (attention scale folded into the Q slab)
    wo_ref,      # (H, hd, D)    bf16
    w1_ref,      # (D, I)        bf16
    w2_ref,      # (I, D)        bf16
    bqkv_ref,    # (3, H, 1, hd) f32   (scale folded into the Q slab)
    b1_ref,      # (1, I)        f32
    vecs_ref,    # (6, D)        f32   rows: ln1_w, ln1_b, ln2_w, ln2_b, b_o, b_fc2
    o_ref,       # (1, TQ, D)    f32
    k_sc,        # (H, S, hd)    bf16  scratch (persists across q-tiles)
    v_sc,        # (H, S, hd)    bf16  scratch
    *, num_heads, tq, eps,
):
    qi = pl.program_id(1)
    S, D = x_ref.shape[1], x_ref.shape[2]
    hd = D // num_heads

    ln1_w = vecs_ref[0:1, :]
    ln1_b = vecs_ref[1:2, :]
    ln2_w = vecs_ref[2:3, :]
    ln2_b = vecs_ref[3:4, :]
    b_o = vecs_ref[4:5, :]
    b_fc2 = vecs_ref[5:6, :]

    # ---- K/V projection over the full sequence, once per batch (qi == 0) ----
    @pl.when(qi == 0)
    def _():
        xf = x_ref[0]                                                   # (S, D)
        hf = _layer_norm(xf, ln1_w, ln1_b, eps).astype(jnp.bfloat16)
        for h in range(num_heads):                 # leading-dim indexing only
            k_h = jnp.dot(hf, wqkv_ref[1, h],
                          preferred_element_type=jnp.float32) + bqkv_ref[1, h]
            v_h = jnp.dot(hf, wqkv_ref[2, h],
                          preferred_element_type=jnp.float32) + bqkv_ref[2, h]
            k_sc[h] = k_h.astype(jnp.bfloat16)
            v_sc[h] = v_h.astype(jnp.bfloat16)

    # ---- q-tile rows of this grid step ----
    row0 = pl.multiple_of(qi * tq, tq)
    xq = x_ref[0, pl.ds(row0, tq), :]                                   # (TQ, D) residual
    hq = _layer_norm(xq, ln1_w, ln1_b, eps)
    hq_b = hq.astype(jnp.bfloat16)

    # ---- attention: per-head loop, head-merge folded into the out-projection
    attn = jnp.zeros((tq, D), jnp.float32)
    for h in range(num_heads):
        q_h = jnp.dot(hq_b, wqkv_ref[0, h],
                      preferred_element_type=jnp.float32) + bqkv_ref[0, h]   # (TQ, hd) pre-scaled
        s = jax.lax.dot_general(q_h.astype(jnp.bfloat16), k_sc[h],
                                (((1,), (1,)), ((), ())),
                                preferred_element_type=jnp.float32)          # (TQ, S)
        m = jnp.max(s, axis=-1, keepdims=True)
        e = jnp.exp(s - m)
        p = e / jnp.sum(e, axis=-1, keepdims=True)                           # exact softmax (f32)
        ctx = jnp.dot(p.astype(jnp.bfloat16), v_sc[h],
                      preferred_element_type=jnp.float32)                    # (TQ, hd)
        attn = attn + jnp.dot(ctx.astype(jnp.bfloat16), wo_ref[h],
                              preferred_element_type=jnp.float32)            # (TQ, D)
    attn = attn + b_o

    # ---- residual 1 ----
    h1 = xq + attn

    # ---- LayerNorm 2 + MLP ----
    h2 = _layer_norm(h1, ln2_w, ln2_b, eps)
    m1 = jnp.dot(h2.astype(jnp.bfloat16), w1_ref[...],
                 preferred_element_type=jnp.float32) + b1_ref[...]
    m1 = _gelu_tanh(m1)
    m2 = jnp.dot(m1.astype(jnp.bfloat16), w2_ref[...],
                 preferred_element_type=jnp.float32) + b_fc2

    o_ref[0] = h1 + m2


# ---------------------------------------------------------------------------
# Wrapper: (batch, q-tile) grid, resident weights with constant index_maps.
# ---------------------------------------------------------------------------
def siglip_encoder_layer(x, prepared, *, tq=TQ):
    B, S, D = x.shape
    assert S % tq == 0
    H = NUM_HEADS
    hd = D // H
    I = INTERMEDIATE
    nq = S // tq

    def resident(shape):
        def idx(b, qi):
            return (0,) * len(shape)
        return pl.BlockSpec(shape, idx)

    in_specs = [
        pl.BlockSpec((1, S, D), lambda b, qi: (b, 0, 0)),  # x: full seq of batch b
        resident((3, H, D, hd)),                           # wqkv_h
        resident((H, hd, D)),                              # wo_h
        resident((D, I)),                                  # w1
        resident((I, D)),                                  # w2
        resident((3, H, 1, hd)),                           # bqkv_h
        resident((1, I)),                                  # b1
        resident((6, D)),                                  # vecs
    ]
    out_specs = pl.BlockSpec((1, tq, D), lambda b, qi: (b, qi, 0))

    return pl.pallas_call(
        functools.partial(siglip_encoder_layer_kernel,
                          num_heads=H, tq=tq, eps=LN_EPS),
        out_shape=jax.ShapeDtypeStruct((B, S, D), jnp.float32),
        grid=(B, nq),
        in_specs=in_specs,
        out_specs=out_specs,
        scratch_shapes=[
            pltpu.VMEM((H, S, hd), jnp.bfloat16),   # K scratch (per batch)
            pltpu.VMEM((H, S, hd), jnp.bfloat16),   # V scratch (per batch)
        ],
        compiler_params=pltpu.CompilerParams(
            dimension_semantics=("parallel", "arbitrary"),
            vmem_limit_bytes=32 * 1024 * 1024,
        ),
    )(x, prepared["wqkv_h"], prepared["wo_h"], prepared["w1"], prepared["w2"],
      prepared["bqkv_h"], prepared["b1"], prepared["vecs"])


# ---------------------------------------------------------------------------
# Offline parameter prep: head-major re-layout, scale folding, bf16 weights.
# ---------------------------------------------------------------------------
def prepare_params(p):
    D, H, hd = HIDDEN, NUM_HEADS, HEAD_DIM
    scale = jnp.float32(SCALE)

    def heads_w(w):   # (D, D) -> (H, D, hd); columns h*hd+d -> [h, :, d]
        return w.reshape(D, H, hd).transpose(1, 0, 2)

    def heads_b(b):   # (1, D) -> (H, 1, hd)
        return b.reshape(1, H, hd).transpose(1, 0, 2)

    wqkv_h = jnp.stack(
        [heads_w(p["wq"] * scale), heads_w(p["wk"]), heads_w(p["wv"])], axis=0)
    bqkv_h = jnp.stack(
        [heads_b(p["bq"] * scale), heads_b(p["bk"]), heads_b(p["bv"])], axis=0)
    wo_h = p["wo"].reshape(H, hd, D)   # row h*hd+d -> [h, d, :]
    vecs = jnp.concatenate(
        [p["ln1_w"], p["ln1_b"], p["ln2_w"], p["ln2_b"], p["bo"], p["b2"]], axis=0)

    return {
        "wqkv_h": wqkv_h.astype(jnp.bfloat16),
        "wo_h": wo_h.astype(jnp.bfloat16),
        "w1": p["w1"].astype(jnp.bfloat16),
        "w2": p["w2"].astype(jnp.bfloat16),
        "bqkv_h": bqkv_h.astype(jnp.float32),
        "b1": p["b1"].astype(jnp.float32),
        "vecs": vecs.astype(jnp.float32),
    }


# ---------------------------------------------------------------------------
# Pure-JAX reference (mirrors the PyTorch forward exactly, full f32).
# ---------------------------------------------------------------------------
def reference_forward(x, p):
    def ln(x, w, b):
        mu = jnp.mean(x, axis=-1, keepdims=True)
        var = jnp.mean((x - mu) ** 2, axis=-1, keepdims=True)
        return (x - mu) * jax.lax.rsqrt(var + LN_EPS) * w[0] + b[0]

    B, S, D = x.shape
    res = x
    h = ln(x, p["ln1_w"], p["ln1_b"])
    q = h @ p["wq"] + p["bq"][0]
    k = h @ p["wk"] + p["bk"][0]
    v = h @ p["wv"] + p["bv"][0]
    q = q.reshape(B, S, NUM_HEADS, HEAD_DIM).transpose(0, 2, 1, 3)
    k = k.reshape(B, S, NUM_HEADS, HEAD_DIM).transpose(0, 2, 1, 3)
    v = v.reshape(B, S, NUM_HEADS, HEAD_DIM).transpose(0, 2, 1, 3)
    scores = jnp.einsum("bhqd,bhkd->bhqk", q, k) * SCALE
    w = jax.nn.softmax(scores.astype(jnp.float32), axis=-1)
    a = jnp.einsum("bhqk,bhkd->bhqd", w, v)
    a = a.transpose(0, 2, 1, 3).reshape(B, S, D)
    a = a @ p["wo"] + p["bo"][0]
    h1 = a + res
    h = ln(h1, p["ln2_w"], p["ln2_b"])
    m = h @ p["w1"] + p["b1"][0]
    m = _gelu_tanh(m)
    m = m @ p["w2"] + p["b2"][0]
    return h1 + m


# ---------------------------------------------------------------------------
# Deterministic parameter init + run.
# ---------------------------------------------------------------------------
def make_params(key):
    ks = jax.random.split(key, 12)
    std = 0.02
    return {
        "wq": jax.random.normal(ks[0], (HIDDEN, HIDDEN), jnp.float32) * std,
        "bq": jax.random.normal(ks[1], (1, HIDDEN), jnp.float32) * std,
        "wk": jax.random.normal(ks[2], (HIDDEN, HIDDEN), jnp.float32) * std,
        "bk": jax.random.normal(ks[3], (1, HIDDEN), jnp.float32) * std,
        "wv": jax.random.normal(ks[4], (HIDDEN, HIDDEN), jnp.float32) * std,
        "bv": jax.random.normal(ks[5], (1, HIDDEN), jnp.float32) * std,
        "wo": jax.random.normal(ks[6], (HIDDEN, HIDDEN), jnp.float32) * std,
        "bo": jax.random.normal(ks[7], (1, HIDDEN), jnp.float32) * std,
        "ln1_w": jnp.ones((1, HIDDEN), jnp.float32),
        "ln1_b": jnp.zeros((1, HIDDEN), jnp.float32),
        "ln2_w": jnp.ones((1, HIDDEN), jnp.float32),
        "ln2_b": jnp.zeros((1, HIDDEN), jnp.float32),
        "w1": jax.random.normal(ks[8], (HIDDEN, INTERMEDIATE), jnp.float32) * std,
        "b1": jax.random.normal(ks[9], (1, INTERMEDIATE), jnp.float32) * std,
        "w2": jax.random.normal(ks[10], (INTERMEDIATE, HIDDEN), jnp.float32) * std,
        "b2": jax.random.normal(ks[11], (1, HIDDEN), jnp.float32) * std,
    }


if __name__ == "__main__":
    key = jax.random.PRNGKey(0)
    k_x, k_p = jax.random.split(key)
    x = jax.random.normal(k_x, (BATCH, SEQ, HIDDEN), jnp.float32)
    raw_params = make_params(k_p)
    prepared = prepare_params(raw_params)

    out = siglip_encoder_layer(x, prepared)
    out = jax.block_until_ready(out)

    ref = reference_forward(x, raw_params)
    assert out.shape == (BATCH, SEQ, HIDDEN)
    max_err = float(jnp.max(jnp.abs(out - ref)))
    # bf16 MXU inputs vs. pure-f32 reference.
    assert jnp.allclose(out, ref, rtol=2e-2, atol=2e-2), max_err
    print("KERNEL_OK")
</pallas_src>

<mosaic_0001>
module attributes {stable_mosaic.version = 11 : i64} {
  func.func @siglip_encoder_layer_kernel(%arg0: i32, %arg1: i32, %arg2: memref<1x16x32xf32, #tpu.memory_space<vmem>>, %arg3: memref<3x4x32x8xbf16, #tpu.memory_space<vmem>>, %arg4: memref<4x8x32xbf16, #tpu.memory_space<vmem>>, %arg5: memref<32x64xbf16, #tpu.memory_space<vmem>>, %arg6: memref<64x32xbf16, #tpu.memory_space<vmem>>, %arg7: memref<3x4x1x8xf32, #tpu.memory_space<vmem>>, %arg8: memref<1x64xf32, #tpu.memory_space<vmem>>, %arg9: memref<6x32xf32, #tpu.memory_space<vmem>>, %arg10: memref<1x8x32xf32, #tpu.memory_space<vmem>>, %arg11: memref<4x16x8xbf16, #tpu.memory_space<vmem>>, %arg12: memref<4x16x8xbf16, #tpu.memory_space<vmem>>) attributes {dimension_semantics = [#tpu.dimension_semantics<parallel>, #tpu.dimension_semantics<arbitrary>], iteration_bounds = array<i64: 2, 2>, scalar_prefetch = 0 : i64, scratch_operands = 2 : i64, tpu.core_type = #tpu.core_type<tc>, window_params = [{transform_indices = @transform_0, window_bounds = array<i64: 1, 16, 32>}, {pipeline_mode = #tpu.pipeline_mode<synchronous>, transform_indices = @transform_1, window_bounds = array<i64: 3, 4, 32, 8>}, {pipeline_mode = #tpu.pipeline_mode<synchronous>, transform_indices = @transform_2, window_bounds = array<i64: 4, 8, 32>}, {pipeline_mode = #tpu.pipeline_mode<synchronous>, transform_indices = @transform_3, window_bounds = array<i64: 32, 64>}, {pipeline_mode = #tpu.pipeline_mode<synchronous>, transform_indices = @transform_4, window_bounds = array<i64: 64, 32>}, {pipeline_mode = #tpu.pipeline_mode<synchronous>, transform_indices = @transform_5, window_bounds = array<i64: 3, 4, 1, 8>}, {pipeline_mode = #tpu.pipeline_mode<synchronous>, transform_indices = @transform_6, window_bounds = array<i64: 1, 64>}, {pipeline_mode = #tpu.pipeline_mode<synchronous>, transform_indices = @transform_7, window_bounds = array<i64: 6, 32>}, {transform_indices = @transform_8, window_bounds = array<i64: 1, 8, 32>}]} {
    %c0 = arith.constant 0 : index
    %c0_0 = arith.constant 0 : index
    %0 = vector.load %arg9[%c0, %c0_0] : memref<6x32xf32, #tpu.memory_space<vmem>>, vector<1x32xf32>
    %c1 = arith.constant 1 : index
    %c0_1 = arith.constant 0 : index
    %1 = vector.load %arg9[%c1, %c0_1] : memref<6x32xf32, #tpu.memory_space<vmem>>, vector<1x32xf32>
    %c2 = arith.constant 2 : index
    %c0_2 = arith.constant 0 : index
    %2 = vector.load %arg9[%c2, %c0_2] : memref<6x32xf32, #tpu.memory_space<vmem>>, vector<1x32xf32>
    %c3 = arith.constant 3 : index
    %c0_3 = arith.constant 0 : index
    %3 = vector.load %arg9[%c3, %c0_3] : memref<6x32xf32, #tpu.memory_space<vmem>>, vector<1x32xf32>
    %c4 = arith.constant 4 : index
    %c0_4 = arith.constant 0 : index
    %4 = vector.load %arg9[%c4, %c0_4] : memref<6x32xf32, #tpu.memory_space<vmem>>, vector<1x32xf32>
    %c5 = arith.constant 5 : index
    %c0_5 = arith.constant 0 : index
    %5 = vector.load %arg9[%c5, %c0_5] : memref<6x32xf32, #tpu.memory_space<vmem>>, vector<1x32xf32>
    %c0_i32 = arith.constant 0 : i32
    %6 = arith.cmpi eq, %arg1, %c0_i32 : i32
    %7 = arith.extui %6 : i1 to i32
    %c0_i32_6 = arith.constant 0 : i32
    %8 = arith.cmpi ne, %7, %c0_i32_6 : i32
    scf.if %8 {
      %c0_128 = arith.constant 0 : index
      %c0_129 = arith.constant 0 : index
      %c0_130 = arith.constant 0 : index
      %211 = vector.load %arg2[%c0_128, %c0_129, %c0_130] : memref<1x16x32xf32, #tpu.memory_space<vmem>>, vector<1x16x32xf32>
      %212 = vector.shape_cast %211 : vector<1x16x32xf32> to vector<16x32xf32>
      %cst_131 = arith.constant dense<0.000000e+00> : vector<16xf32>
      %213 = vector.multi_reduction <add>, %212, %cst_131 [1] : vector<16x32xf32> to vector<16xf32>
      %214 = vector.shape_cast %213 : vector<16xf32> to vector<16x1xf32>
      %cst_132 = arith.constant 3.200000e+01 : f32
      %215 = vector.broadcast %cst_132 : f32 to vector<16x1xf32>
      %216 = arith.divf %214, %215 : vector<16x1xf32>
      %217 = arith.mulf %212, %212 : vector<16x32xf32>
      %cst_133 = arith.constant dense<0.000000e+00> : vector<16xf32>
      %218 = vector.multi_reduction <add>, %217, %cst_133 [1] : vector<16x32xf32> to vector<16xf32>
      %219 = vector.shape_cast %218 : vector<16xf32> to vector<16x1xf32>
      %cst_134 = arith.constant 3.200000e+01 : f32
      %220 = vector.broadcast %cst_134 : f32 to vector<16x1xf32>
      %221 = arith.divf %219, %220 : vector<16x1xf32>
      %222 = arith.mulf %216, %216 : vector<16x1xf32>
      %223 = arith.subf %221, %222 : vector<16x1xf32>
      %cst_135 = arith.constant 0.000000e+00 : f32
      %224 = vector.broadcast %cst_135 : f32 to vector<16x1xf32>
      %225 = arith.maximumf %223, %224 : vector<16x1xf32>
      %226 = vector.broadcast %216 : vector<16x1xf32> to vector<16x32xf32>
      %227 = arith.subf %212, %226 : vector<16x32xf32>
      %cst_136 = arith.constant 9.99999997E-7 : f32
      %228 = vector.broadcast %cst_136 : f32 to vector<16x1xf32>
      %229 = arith.addf %225, %228 : vector<16x1xf32>
      %230 = math.rsqrt %229 : vector<16x1xf32>
      %231 = vector.broadcast %230 : vector<16x1xf32> to vector<16x32xf32>
      %232 = arith.mulf %227, %231 : vector<16x32xf32>
      %233 = vector.broadcast %0 : vector<1x32xf32> to vector<16x32xf32>
      %234 = arith.mulf %232, %233 : vector<16x32xf32>
      %235 = vector.broadcast %1 : vector<1x32xf32> to vector<16x32xf32>
      %236 = arith.addf %234, %235 : vector<16x32xf32>
      %237 = arith.truncf %236 : vector<16x32xf32> to vector<16x32xbf16>
      %c1_137 = arith.constant 1 : index
      %c0_138 = arith.constant 0 : index
      %c0_139 = arith.constant 0 : index
      %c0_140 = arith.constant 0 : index
      %238 = vector.load %arg3[%c1_137, %c0_138, %c0_139, %c0_140] : memref<3x4x32x8xbf16, #tpu.memory_space<vmem>>, vector<1x1x32x8xbf16>
      %239 = vector.shape_cast %238 : vector<1x1x32x8xbf16> to vector<32x8xbf16>
      %cst_141 = arith.constant dense<0.000000e+00> : vector<16x8xf32>
      %240 = tpu.matmul %237, %239, %cst_141 {dimension_numbers = #tpu.dot_dimension_numbers<[1], [0], [0], [1], [0, 0, 1, 1], [], []>} : vector<16x32xbf16>, vector<32x8xbf16>, vector<16x8xf32> -> vector<16x8xf32>
      %c1_142 = arith.constant 1 : index
      %c0_143 = arith.constant 0 : index
      %c0_144 = arith.constant 0 : index
      %c0_145 = arith.constant 0 : index
      %241 = vector.load %arg7[%c1_142, %c0_143, %c0_144, %c0_145] : memref<3x4x1x8xf32, #tpu.memory_space<vmem>>, vector<1x1x1x8xf32>
      %242 = vector.shape_cast %241 : vector<1x1x1x8xf32> to vector<1x8xf32>
      %243 = vector.broadcast %242 : vector<1x8xf32> to vector<16x8xf32>
      %244 = arith.addf %240, %243 : vector<16x8xf32>
      %c2_146 = arith.constant 2 : index
      %c0_147 = arith.constant 0 : index
      %c0_148 = arith.constant 0 : index
      %c0_149 = arith.constant 0 : index
      %245 = vector.load %arg3[%c2_146, %c0_147, %c0_148, %c0_149] : memref<3x4x32x8xbf16, #tpu.memory_space<vmem>>, vector<1x1x32x8xbf16>
      %246 = vector.shape_cast %245 : vector<1x1x32x8xbf16> to vector<32x8xbf16>
      %cst_150 = arith.constant dense<0.000000e+00> : vector<16x8xf32>
      %247 = tpu.matmul %237, %246, %cst_150 {dimension_numbers = #tpu.dot_dimension_numbers<[1], [0], [0], [1], [0, 0, 1, 1], [], []>} : vector<16x32xbf16>, vector<32x8xbf16>, vector<16x8xf32> -> vector<16x8xf32>
      %c2_151 = arith.constant 2 : index
      %c0_152 = arith.constant 0 : index
      %c0_153 = arith.constant 0 : index
      %c0_154 = arith.constant 0 : index
      %248 = vector.load %arg7[%c2_151, %c0_152, %c0_153, %c0_154] : memref<3x4x1x8xf32, #tpu.memory_space<vmem>>, vector<1x1x1x8xf32>
      %249 = vector.shape_cast %248 : vector<1x1x1x8xf32> to vector<1x8xf32>
      %250 = vector.broadcast %249 : vector<1x8xf32> to vector<16x8xf32>
      %251 = arith.addf %247, %250 : vector<16x8xf32>
      %252 = arith.truncf %244 : vector<16x8xf32> to vector<16x8xbf16>
      %c0_155 = arith.constant 0 : index
      %c0_156 = arith.constant 0 : index
      %c0_157 = arith.constant 0 : index
      %253 = vector.load %arg11[%c0_155, %c0_156, %c0_157] : memref<4x16x8xbf16, #tpu.memory_space<vmem>>, vector<1x16x8xbf16>
      %254 = vector.shape_cast %253 : vector<1x16x8xbf16> to vector<16x8xbf16>
      %255 = vector.shape_cast %252 : vector<16x8xbf16> to vector<1x16x8xbf16>
      tpu.vector_store %arg11[%c0_155, %c0_156, %c0_157], %255 {strides = array<i32>} : memref<4x16x8xbf16, #tpu.memory_space<vmem>>, vector<1x16x8xbf16>,
      %256 = arith.truncf %251 : vector<16x8xf32> to vector<16x8xbf16>
      %c0_158 = arith.constant 0 : index
      %c0_159 = arith.constant 0 : index
      %c0_160 = arith.constant 0 : index
      %257 = vector.load %arg12[%c0_158, %c0_159, %c0_160] : memref<4x16x8xbf16, #tpu.memory_space<vmem>>, vector<1x16x8xbf16>
      %258 = vector.shape_cast %257 : vector<1x16x8xbf16> to vector<16x8xbf16>
      %259 = vector.shape_cast %256 : vector<16x8xbf16> to vector<1x16x8xbf16>
      tpu.vector_store %arg12[%c0_158, %c0_159, %c0_160], %259 {strides = array<i32>} : memref<4x16x8xbf16, #tpu.memory_space<vmem>>, vector<1x16x8xbf16>,
      %c1_161 = arith.constant 1 : index
      %c1_162 = arith.constant 1 : index
      %c0_163 = arith.constant 0 : index
      %c0_164 = arith.constant 0 : index
      %260 = vector.load %arg3[%c1_161, %c1_162, %c0_163, %c0_164] : memref<3x4x32x8xbf16, #tpu.memory_space<vmem>>, vector<1x1x32x8xbf16>
      %261 = vector.shape_cast %260 : vector<1x1x32x8xbf16> to vector<32x8xbf16>
      %cst_165 = arith.constant dense<0.000000e+00> : vector<16x8xf32>
      %262 = tpu.matmul %237, %261, %cst_165 {dimension_numbers = #tpu.dot_dimension_numbers<[1], [0], [0], [1], [0, 0, 1, 1], [], []>} : vector<16x32xbf16>, vector<32x8xbf16>, vector<16x8xf32> -> vector<16x8xf32>
      %c1_166 = arith.constant 1 : index
      %c1_167 = arith.constant 1 : index
      %c0_168 = arith.constant 0 : index
      %c0_169 = arith.constant 0 : index
      %263 = vector.load %arg7[%c1_166, %c1_167, %c0_168, %c0_169] : memref<3x4x1x8xf32, #tpu.memory_space<vmem>>, vector<1x1x1x8xf32>
      %264 = vector.shape_cast %263 : vector<1x1x1x8xf32> to vector<1x8xf32>
      %265 = vector.broadcast %264 : vector<1x8xf32> to vector<16x8xf32>
      %266 = arith.addf %262, %265 : vector<16x8xf32>
      %c2_170 = arith.constant 2 : index
      %c1_171 = arith.constant 1 : index
      %c0_172 = arith.constant 0 : index
      %c0_173 = arith.constant 0 : index
      %267 = vector.load %arg3[%c2_170, %c1_171, %c0_172, %c0_173] : memref<3x4x32x8xbf16, #tpu.memory_space<vmem>>, vector<1x1x32x8xbf16>
      %268 = vector.shape_cast %267 : vector<1x1x32x8xbf16> to vector<32x8xbf16>
      %cst_174 = arith.constant dense<0.000000e+00> : vector<16x8xf32>
      %269 = tpu.matmul %237, %268, %cst_174 {dimension_numbers = #tpu.dot_dimension_numbers<[1], [0], [0], [1], [0, 0, 1, 1], [], []>} : vector<16x32xbf16>, vector<32x8xbf16>, vector<16x8xf32> -> vector<16x8xf32>
      %c2_175 = arith.constant 2 : index
      %c1_176 = arith.constant 1 : index
      %c0_177 = arith.constant 0 : index
      %c0_178 = arith.constant 0 : index
      %270 = vector.load %arg7[%c2_175, %c1_176, %c0_177, %c0_178] : memref<3x4x1x8xf32, #tpu.memory_space<vmem>>, vector<1x1x1x8xf32>
      %271 = vector.shape_cast %270 : vector<1x1x1x8xf32> to vector<1x8xf32>
      %272 = vector.broadcast %271 : vector<1x8xf32> to vector<16x8xf32>
      %273 = arith.addf %269, %272 : vector<16x8xf32>
      %274 = arith.truncf %266 : vector<16x8xf32> to vector<16x8xbf16>
      %c1_179 = arith.constant 1 : index
      %c0_180 = arith.constant 0 : index
      %c0_181 = arith.constant 0 : index
      %275 = vector.load %arg11[%c1_179, %c0_180, %c0_181] : memref<4x16x8xbf16, #tpu.memory_space<vmem>>, vector<1x16x8xbf16>
      %276 = vector.shape_cast %275 : vector<1x16x8xbf16> to vector<16x8xbf16>
      %277 = vector.shape_cast %274 : vector<16x8xbf16> to vector<1x16x8xbf16>
      tpu.vector_store %arg11[%c1_179, %c0_180, %c0_181], %277 {strides = array<i32>} : memref<4x16x8xbf16, #tpu.memory_space<vmem>>, vector<1x16x8xbf16>,
      %278 = arith.truncf %273 : vector<16x8xf32> to vector<16x8xbf16>
      %c1_182 = arith.constant 1 : index
      %c0_183 = arith.constant 0 : index
      %c0_184 = arith.constant 0 : index
      %279 = vector.load %arg12[%c1_182, %c0_183, %c0_184] : memref<4x16x8xbf16, #tpu.memory_space<vmem>>, vector<1x16x8xbf16>
      %280 = vector.shape_cast %279 : vector<1x16x8xbf16> to vector<16x8xbf16>
      %281 = vector.shape_cast %278 : vector<16x8xbf16> to vector<1x16x8xbf16>
      tpu.vector_store %arg12[%c1_182, %c0_183, %c0_184], %281 {strides = array<i32>} : memref<4x16x8xbf16, #tpu.memory_space<vmem>>, vector<1x16x8xbf16>,
      %c1_185 = arith.constant 1 : index
      %c2_186 = arith.constant 2 : index
      %c0_187 = arith.constant 0 : index
      %c0_188 = arith.constant 0 : index
      %282 = vector.load %arg3[%c1_185, %c2_186, %c0_187, %c0_188] : memref<3x4x32x8xbf16, #tpu.memory_space<vmem>>, vector<1x1x32x8xbf16>
      %283 = vector.shape_cast %282 : vector<1x1x32x8xbf16> to vector<32x8xbf16>
      %cst_189 = arith.constant dense<0.000000e+00> : vector<16x8xf32>
      %284 = tpu.matmul %237, %283, %cst_189 {dimension_numbers = #tpu.dot_dimension_numbers<[1], [0], [0], [1], [0, 0, 1, 1], [], []>} : vector<16x32xbf16>, vector<32x8xbf16>, vector<16x8xf32> -> vector<16x8xf32>
      %c1_190 = arith.constant 1 : index
      %c2_191 = arith.constant 2 : index
      %c0_192 = arith.constant 0 : index
      %c0_193 = arith.constant 0 : index
      %285 = vector.load %arg7[%c1_190, %c2_191, %c0_192, %c0_193] : memref<3x4x1x8xf32, #tpu.memory_space<vmem>>, vector<1x1x1x8xf32>
      %286 = vector.shape_cast %285 : vector<1x1x1x8xf32> to vector<1x8xf32>
      %287 = vector.broadcast %286 : vector<1x8xf32> to vector<16x8xf32>
      %288 = arith.addf %284, %287 : vector<16x8xf32>
      %c2_194 = arith.constant 2 : index
      %c2_195 = arith.constant 2 : index
      %c0_196 = arith.constant 0 : index
      %c0_197 = arith.constant 0 : index
      %289 = vector.load %arg3[%c2_194, %c2_195, %c0_196, %c0_197] : memref<3x4x32x8xbf16, #tpu.memory_space<vmem>>, vector<1x1x32x8xbf16>
      %290 = vector.shape_cast %289 : vector<1x1x32x8xbf16> to vector<32x8xbf16>
      %cst_198 = arith.constant dense<0.000000e+00> : vector<16x8xf32>
      %291 = tpu.matmul %237, %290, %cst_198 {dimension_numbers = #tpu.dot_dimension_numbers<[1], [0], [0], [1], [0, 0, 1, 1], [], []>} : vector<16x32xbf16>, vector<32x8xbf16>, vector<16x8xf32> -> vector<16x8xf32>
      %c2_199 = arith.constant 2 : index
      %c2_200 = arith.constant 2 : index
      %c0_201 = arith.constant 0 : index
      %c0_202 = arith.constant 0 : index
      %292 = vector.load %arg7[%c2_199, %c2_200, %c0_201, %c0_202] : memref<3x4x1x8xf32, #tpu.memory_space<vmem>>, vector<1x1x1x8xf32>
      %293 = vector.shape_cast %292 : vector<1x1x1x8xf32> to vector<1x8xf32>
      %294 = vector.broadcast %293 : vector<1x8xf32> to vector<16x8xf32>
      %295 = arith.addf %291, %294 : vector<16x8xf32>
      %296 = arith.truncf %288 : vector<16x8xf32> to vector<16x8xbf16>
      %c2_203 = arith.constant 2 : index
      %c0_204 = arith.constant 0 : index
      %c0_205 = arith.constant 0 : index
      %297 = vector.load %arg11[%c2_203, %c0_204, %c0_205] : memref<4x16x8xbf16, #tpu.memory_space<vmem>>, vector<1x16x8xbf16>
      %298 = vector.shape_cast %297 : vector<1x16x8xbf16> to vector<16x8xbf16>
      %299 = vector.shape_cast %296 : vector<16x8xbf16> to vector<1x16x8xbf16>
      tpu.vector_store %arg11[%c2_203, %c0_204, %c0_205], %299 {strides = array<i32>} : memref<4x16x8xbf16, #tpu.memory_space<vmem>>, vector<1x16x8xbf16>,
      %300 = arith.truncf %295 : vector<16x8xf32> to vector<16x8xbf16>
      %c2_206 = arith.constant 2 : index
      %c0_207 = arith.constant 0 : index
      %c0_208 = arith.constant 0 : index
      %301 = vector.load %arg12[%c2_206, %c0_207, %c0_208] : memref<4x16x8xbf16, #tpu.memory_space<vmem>>, vector<1x16x8xbf16>
      %302 = vector.shape_cast %301 : vector<1x16x8xbf16> to vector<16x8xbf16>
      %303 = vector.shape_cast %300 : vector<16x8xbf16> to vector<1x16x8xbf16>
      tpu.vector_store %arg12[%c2_206, %c0_207, %c0_208], %303 {strides = array<i32>} : memref<4x16x8xbf16, #tpu.memory_space<vmem>>, vector<1x16x8xbf16>,
      %c1_209 = arith.constant 1 : index
      %c3_210 = arith.constant 3 : index
      %c0_211 = arith.constant 0 : index
      %c0_212 = arith.constant 0 : index
      %304 = vector.load %arg3[%c1_209, %c3_210, %c0_211, %c0_212] : memref<3x4x32x8xbf16, #tpu.memory_space<vmem>>, vector<1x1x32x8xbf16>
      %305 = vector.shape_cast %304 : vector<1x1x32x8xbf16> to vector<32x8xbf16>
      %cst_213 = arith.constant dense<0.000000e+00> : vector<16x8xf32>
      %306 = tpu.matmul %237, %305, %cst_213 {dimension_numbers = #tpu.dot_dimension_numbers<[1], [0], [0], [1], [0, 0, 1, 1], [], []>} : vector<16x32xbf16>, vector<32x8xbf16>, vector<16x8xf32> -> vector<16x8xf32>
      %c1_214 = arith.constant 1 : index
      %c3_215 = arith.constant 3 : index
      %c0_216 = arith.constant 0 : index
      %c0_217 = arith.constant 0 : index
      %307 = vector.load %arg7[%c1_214, %c3_215, %c0_216, %c0_217] : memref<3x4x1x8xf32, #tpu.memory_space<vmem>>, vector<1x1x1x8xf32>
      %308 = vector.shape_cast %307 : vector<1x1x1x8xf32> to vector<1x8xf32>
      %309 = vector.broadcast %308 : vector<1x8xf32> to vector<16x8xf32>
      %310 = arith.addf %306, %309 : vector<16x8xf32>
      %c2_218 = arith.constant 2 : index
      %c3_219 = arith.constant 3 : index
      %c0_220 = arith.constant 0 : index
      %c0_221 = arith.constant 0 : index
      %311 = vector.load %arg3[%c2_218, %c3_219, %c0_220, %c0_221] : memref<3x4x32x8xbf16, #tpu.memory_space<vmem>>, vector<1x1x32x8xbf16>
      %312 = vector.shape_cast %311 : vector<1x1x32x8xbf16> to vector<32x8xbf16>
      %cst_222 = arith.constant dense<0.000000e+00> : vector<16x8xf32>
      %313 = tpu.matmul %237, %312, %cst_222 {dimension_numbers = #tpu.dot_dimension_numbers<[1], [0], [0], [1], [0, 0, 1, 1], [], []>} : vector<16x32xbf16>, vector<32x8xbf16>, vector<16x8xf32> -> vector<16x8xf32>
      %c2_223 = arith.constant 2 : index
      %c3_224 = arith.constant 3 : index
      %c0_225 = arith.constant 0 : index
      %c0_226 = arith.constant 0 : index
      %314 = vector.load %arg7[%c2_223, %c3_224, %c0_225, %c0_226] : memref<3x4x1x8xf32, #tpu.memory_space<vmem>>, vector<1x1x1x8xf32>
      %315 = vector.shape_cast %314 : vector<1x1x1x8xf32> to vector<1x8xf32>
      %316 = vector.broadcast %315 : vector<1x8xf32> to vector<16x8xf32>
      %317 = arith.addf %313, %316 : vector<16x8xf32>
      %318 = arith.truncf %310 : vector<16x8xf32> to vector<16x8xbf16>
      %c3_227 = arith.constant 3 : index
      %c0_228 = arith.constant 0 : index
      %c0_229 = arith.constant 0 : index
      %319 = vector.load %arg11[%c3_227, %c0_228, %c0_229] : memref<4x16x8xbf16, #tpu.memory_space<vmem>>, vector<1x16x8xbf16>
      %320 = vector.shape_cast %319 : vector<1x16x8xbf16> to vector<16x8xbf16>
      %321 = vector.shape_cast %318 : vector<16x8xbf16> to vector<1x16x8xbf16>
      tpu.vector_store %arg11[%c3_227, %c0_228, %c0_229], %321 {strides = array<i32>} : memref<4x16x8xbf16, #tpu.memory_space<vmem>>, vector<1x16x8xbf16>,
      %322 = arith.truncf %317 : vector<16x8xf32> to vector<16x8xbf16>
      %c3_230 = arith.constant 3 : index
      %c0_231 = arith.constant 0 : index
      %c0_232 = arith.constant 0 : index
      %323 = vector.load %arg12[%c3_230, %c0_231, %c0_232] : memref<4x16x8xbf16, #tpu.memory_space<vmem>>, vector<1x16x8xbf16>
      %324 = vector.shape_cast %323 : vector<1x16x8xbf16> to vector<16x8xbf16>
      %325 = vector.shape_cast %322 : vector<16x8xbf16> to vector<1x16x8xbf16>
      tpu.vector_store %arg12[%c3_230, %c0_231, %c0_232], %325 {strides = array<i32>} : memref<4x16x8xbf16, #tpu.memory_space<vmem>>, vector<1x16x8xbf16>,
    } else {
    }
    %c8_i32 = arith.constant 8 : i32
    %9 = arith.muli %arg1, %c8_i32 : i32
    %10 = tpu.assume_multiple %9, 8 : i32
    %c0_7 = arith.constant 0 : index
    %11 = arith.index_cast %10 : i32 to index
    %c0_8 = arith.constant 0 : index
    %12 = vector.load %arg2[%c0_7, %11, %c0_8] : memref<1x16x32xf32, #tpu.memory_space<vmem>>, vector<1x8x32xf32>
    %13 = vector.shape_cast %12 : vector<1x8x32xf32> to vector<8x32xf32>
    %cst = arith.constant dense<0.000000e+00> : vector<8xf32>
    %14 = vector.multi_reduction <add>, %13, %cst [1] : vector<8x32xf32> to vector<8xf32>
    %15 = vector.shape_cast %14 : vector<8xf32> to vector<8x1xf32>
    %cst_9 = arith.constant 3.200000e+01 : f32
    %16 = vector.broadcast %cst_9 : f32 to vector<8x1xf32>
    %17 = arith.divf %15, %16 : vector<8x1xf32>
    %18 = arith.mulf %13, %13 : vector<8x32xf32>
    %cst_10 = arith.constant dense<0.000000e+00> : vector<8xf32>
    %19 = vector.multi_reduction <add>, %18, %cst_10 [1] : vector<8x32xf32> to vector<8xf32>
    %20 = vector.shape_cast %19 : vector<8xf32> to vector<8x1xf32>
    %cst_11 = arith.constant 3.200000e+01 : f32
    %21 = vector.broadcast %cst_11 : f32 to vector<8x1xf32>
    %22 = arith.divf %20, %21 : vector<8x1xf32>
    %23 = arith.mulf %17, %17 : vector<8x1xf32>
    %24 = arith.subf %22, %23 : vector<8x1xf32>
    %cst_12 = arith.constant 0.000000e+00 : f32
    %25 = vector.broadcast %cst_12 : f32 to vector<8x1xf32>
    %26 = arith.maximumf %24, %25 : vector<8x1xf32>
    %27 = vector.broadcast %17 : vector<8x1xf32> to vector<8x32xf32>
    %28 = arith.subf %13, %27 : vector<8x32xf32>
    %cst_13 = arith.constant 9.99999997E-7 : f32
    %29 = vector.broadcast %cst_13 : f32 to vector<8x1xf32>
    %30 = arith.addf %26, %29 : vector<8x1xf32>
    %31 = math.rsqrt %30 : vector<8x1xf32>
    %32 = vector.broadcast %31 : vector<8x1xf32> to vector<8x32xf32>
    %33 = arith.mulf %28, %32 : vector<8x32xf32>
    %34 = vector.broadcast %0 : vector<1x32xf32> to vector<8x32xf32>
    %35 = arith.mulf %33, %34 : vector<8x32xf32>
    %36 = vector.broadcast %1 : vector<1x32xf32> to vector<8x32xf32>
    %37 = arith.addf %35, %36 : vector<8x32xf32>
    %38 = arith.truncf %37 : vector<8x32xf32> to vector<8x32xbf16>
    %cst_14 = arith.constant 0.000000e+00 : f32
    %39 = vector.broadcast %cst_14 : f32 to vector<8x32xf32>
    %c0_15 = arith.constant 0 : index
    %c0_16 = arith.constant 0 : index
    %c0_17 = arith.constant 0 : index
    %c0_18 = arith.constant 0 : index
    %40 = vector.load %arg3[%c0_15, %c0_16, %c0_17, %c0_18] : memref<3x4x32x8xbf16, #tpu.memory_space<vmem>>, vector<1x1x32x8xbf16>
    %41 = vector.shape_cast %40 : vector<1x1x32x8xbf16> to vector<32x8xbf16>
    %cst_19 = arith.constant dense<0.000000e+00> : vector<8x8xf32>
    %42 = tpu.matmul %38, %41, %cst_19 {dimension_numbers = #tpu.dot_dimension_numbers<[1], [0], [0], [1], [0, 0, 1, 1], [], []>} : vector<8x32xbf16>, vector<32x8xbf16>, vector<8x8xf32> -> vector<8x8xf32>
    %c0_20 = arith.constant 0 : index
    %c0_21 = arith.constant 0 : index
    %c0_22 = arith.constant 0 : index
    %c0_23 = arith.constant 0 : index
    %43 = vector.load %arg7[%c0_20, %c0_21, %c0_22, %c0_23] : memref<3x4x1x8xf32, #tpu.memory_space<vmem>>, vector<1x1x1x8xf32>
    %44 = vector.shape_cast %43 : vector<1x1x1x8xf32> to vector<1x8xf32>
    %45 = vector.broadcast %44 : vector<1x8xf32> to vector<8x8xf32>
    %46 = arith.addf %42, %45 : vector<8x8xf32>
    %47 = arith.truncf %46 : vector<8x8xf32> to vector<8x8xbf16>
    %c0_24 = arith.constant 0 : index
    %c0_25 = arith.constant 0 : index
    %c0_26 = arith.constant 0 : index
    %48 = vector.load %arg11[%c0_24, %c0_25, %c0_26] : memref<4x16x8xbf16, #tpu.memory_space<vmem>>, vector<1x16x8xbf16>
    %49 = vector.shape_cast %48 : vector<1x16x8xbf16> to vector<16x8xbf16>
    %cst_27 = arith.constant dense<0.000000e+00> : vector<8x16xf32>
    %50 = tpu.matmul %47, %49, %cst_27 {dimension_numbers = #tpu.dot_dimension_numbers<[1], [1], [0], [0], [0, 0, 1, 0], [], []>} : vector<8x8xbf16>, vector<16x8xbf16>, vector<8x16xf32> -> vector<8x16xf32>
    %cst_28 = arith.constant dense<0xFF800000> : vector<8xf32>
    %51 = vector.multi_reduction <maximumf>, %50, %cst_28 [1] : vector<8x16xf32> to vector<8xf32>
    %52 = vector.shape_cast %51 : vector<8xf32> to vector<8x1xf32>
    %53 = vector.broadcast %52 : vector<8x1xf32> to vector<8x16xf32>
    %54 = arith.subf %50, %53 : vector<8x16xf32>
    %55 = math.exp %54 : vector<8x16xf32>
    %cst_29 = arith.constant dense<0.000000e+00> : vector<8xf32>
    %56 = vector.multi_reduction <add>, %55, %cst_29 [1] : vector<8x16xf32> to vector<8xf32>
    %57 = vector.shape_cast %56 : vector<8xf32> to vector<8x1xf32>
    %58 = vector.broadcast %57 : vector<8x1xf32> to vector<8x16xf32>
    %59 = arith.divf %55, %58 : vector<8x16xf32>
    %60 = arith.truncf %59 : vector<8x16xf32> to vector<8x16xbf16>
    %c0_30 = arith.constant 0 : index
    %c0_31 = arith.constant 0 : index
    %c0_32 = arith.constant 0 : index
    %61 = vector.load %arg12[%c0_30, %c0_31, %c0_32] : memref<4x16x8xbf16, #tpu.memory_space<vmem>>, vector<1x16x8xbf16>
    %62 = vector.shape_cast %61 : vector<1x16x8xbf16> to vector<16x8xbf16>
    %cst_33 = arith.constant dense<0.000000e+00> : vector<8x8xf32>
    %63 = tpu.matmul %60, %62, %cst_33 {dimension_numbers = #tpu.dot_dimension_numbers<[1], [0], [0], [1], [0, 0, 1, 1], [], []>} : vector<8x16xbf16>, vector<16x8xbf16>, vector<8x8xf32> -> vector<8x8xf32>
    %64 = arith.truncf %63 : vector<8x8xf32> to vector<8x8xbf16>
    %c0_34 = arith.constant 0 : index
    %c0_35 = arith.constant 0 : index
    %c0_36 = arith.constant 0 : index
    %65 = vector.load %arg4[%c0_34, %c0_35, %c0_36] : memref<4x8x32xbf16, #tpu.memory_space<vmem>>, vector<1x8x32xbf16>
    %66 = vector.shape_cast %65 : vector<1x8x32xbf16> to vector<8x32xbf16>
    %cst_37 = arith.constant dense<0.000000e+00> : vector<8x32xf32>
    %67 = tpu.matmul %64, %66, %cst_37 {dimension_numbers = #tpu.dot_dimension_numbers<[1], [0], [0], [1], [0, 0, 1, 1], [], []>} : vector<8x8xbf16>, vector<8x32xbf16>, vector<8x32xf32> -> vector<8x32xf32>
    %68 = arith.addf %39, %67 : vector<8x32xf32>
    %c0_38 = arith.constant 0 : index
    %c1_39 = arith.constant 1 : index
    %c0_40 = arith.constant 0 : index
    %c0_41 = arith.constant 0 : index
    %69 = vector.load %arg3[%c0_38, %c1_39, %c0_40, %c0_41] : memref<3x4x32x8xbf16, #tpu.memory_space<vmem>>, vector<1x1x32x8xbf16>
    %70 = vector.shape_cast %69 : vector<1x1x32x8xbf16> to vector<32x8xbf16>
    %cst_42 = arith.constant dense<0.000000e+00> : vector<8x8xf32>
    %71 = tpu.matmul %38, %70, %cst_42 {dimension_numbers = #tpu.dot_dimension_numbers<[1], [0], [0], [1], [0, 0, 1, 1], [], []>} : vector<8x32xbf16>, vector<32x8xbf16>, vector<8x8xf32> -> vector<8x8xf32>
    %c0_43 = arith.constant 0 : index
    %c1_44 = arith.constant 1 : index
    %c0_45 = arith.constant 0 : index
    %c0_46 = arith.constant 0 : index
    %72 = vector.load %arg7[%c0_43, %c1_44, %c0_45, %c0_46] : memref<3x4x1x8xf32, #tpu.memory_space<vmem>>, vector<1x1x1x8xf32>
    %73 = vector.shape_cast %72 : vector<1x1x1x8xf32> to vector<1x8xf32>
    %74 = vector.broadcast %73 : vector<1x8xf32> to vector<8x8xf32>
    %75 = arith.addf %71, %74 : vector<8x8xf32>
    %76 = arith.truncf %75 : vector<8x8xf32> to vector<8x8xbf16>
    %c1_47 = arith.constant 1 : index
    %c0_48 = arith.constant 0 : index
    %c0_49 = arith.constant 0 : index
    %77 = vector.load %arg11[%c1_47, %c0_48, %c0_49] : memref<4x16x8xbf16, #tpu.memory_space<vmem>>, vector<1x16x8xbf16>
    %78 = vector.shape_cast %77 : vector<1x16x8xbf16> to vector<16x8xbf16>
    %cst_50 = arith.constant dense<0.000000e+00> : vector<8x16xf32>
    %79 = tpu.matmul %76, %78, %cst_50 {dimension_numbers = #tpu.dot_dimension_numbers<[1], [1], [0], [0], [0, 0, 1, 0], [], []>} : vector<8x8xbf16>, vector<16x8xbf16>, vector<8x16xf32> -> vector<8x16xf32>
    %cst_51 = arith.constant dense<0xFF800000> : vector<8xf32>
    %80 = vector.multi_reduction <maximumf>, %79, %cst_51 [1] : vector<8x16xf32> to vector<8xf32>
    %81 = vector.shape_cast %80 : vector<8xf32> to vector<8x1xf32>
    %82 = vector.broadcast %81 : vector<8x1xf32> to vector<8x16xf32>
    %83 = arith.subf %79, %82 : vector<8x16xf32>
    %84 = math.exp %83 : vector<8x16xf32>
    %cst_52 = arith.constant dense<0.000000e+00> : vector<8xf32>
    %85 = vector.multi_reduction <add>, %84, %cst_52 [1] : vector<8x16xf32> to vector<8xf32>
    %86 = vector.shape_cast %85 : vector<8xf32> to vector<8x1xf32>
    %87 = vector.broadcast %86 : vector<8x1xf32> to vector<8x16xf32>
    %88 = arith.divf %84, %87 : vector<8x16xf32>
    %89 = arith.truncf %88 : vector<8x16xf32> to vector<8x16xbf16>
    %c1_53 = arith.constant 1 : index
    %c0_54 = arith.constant 0 : index
    %c0_55 = arith.constant 0 : index
    %90 = vector.load %arg12[%c1_53, %c0_54, %c0_55] : memref<4x16x8xbf16, #tpu.memory_space<vmem>>, vector<1x16x8xbf16>
    %91 = vector.shape_cast %90 : vector<1x16x8xbf16> to vector<16x8xbf16>
    %cst_56 = arith.constant dense<0.000000e+00> : vector<8x8xf32>
    %92 = tpu.matmul %89, %91, %cst_56 {dimension_numbers = #tpu.dot_dimension_numbers<[1], [0], [0], [1], [0, 0, 1, 1], [], []>} : vector<8x16xbf16>, vector<16x8xbf16>, vector<8x8xf32> -> vector<8x8xf32>
    %93 = arith.truncf %92 : vector<8x8xf32> to vector<8x8xbf16>
    %c1_57 = arith.constant 1 : index
    %c0_58 = arith.constant 0 : index
    %c0_59 = arith.constant 0 : index
    %94 = vector.load %arg4[%c1_57, %c0_58, %c0_59] : memref<4x8x32xbf16, #tpu.memory_space<vmem>>, vector<1x8x32xbf16>
    %95 = vector.shape_cast %94 : vector<1x8x32xbf16> to vector<8x32xbf16>
    %cst_60 = arith.constant dense<0.000000e+00> : vector<8x32xf32>
    %96 = tpu.matmul %93, %95, %cst_60 {dimension_numbers = #tpu.dot_dimension_numbers<[1], [0], [0], [1], [0, 0, 1, 1], [], []>} : vector<8x8xbf16>, vector<8x32xbf16>, vector<8x32xf32> -> vector<8x32xf32>
    %97 = arith.addf %68, %96 : vector<8x32xf32>
    %c0_61 = arith.constant 0 : index
    %c2_62 = arith.constant 2 : index
    %c0_63 = arith.constant 0 : index
    %c0_64 = arith.constant 0 : index
    %98 = vector.load %arg3[%c0_61, %c2_62, %c0_63, %c0_64] : memref<3x4x32x8xbf16, #tpu.memory_space<vmem>>, vector<1x1x32x8xbf16>
    %99 = vector.shape_cast %98 : vector<1x1x32x8xbf16> to vector<32x8xbf16>
    %cst_65 = arith.constant dense<0.000000e+00> : vector<8x8xf32>
    %100 = tpu.matmul %38, %99, %cst_65 {dimension_numbers = #tpu.dot_dimension_numbers<[1], [0], [0], [1], [0, 0, 1, 1], [], []>} : vector<8x32xbf16>, vector<32x8xbf16>, vector<8x8xf32> -> vector<8x8xf32>
    %c0_66 = arith.constant 0 : index
    %c2_67 = arith.constant 2 : index
    %c0_68 = arith.constant 0 : index
    %c0_69 = arith.constant 0 : index
    %101 = vector.load %arg7[%c0_66, %c2_67, %c0_68, %c0_69] : memref<3x4x1x8xf32, #tpu.memory_space<vmem>>, vector<1x1x1x8xf32>
    %102 = vector.shape_cast %101 : vector<1x1x1x8xf32> to vector<1x8xf32>
    %103 = vector.broadcast %102 : vector<1x8xf32> to vector<8x8xf32>
    %104 = arith.addf %100, %103 : vector<8x8xf32>
    %105 = arith.truncf %104 : vector<8x8xf32> to vector<8x8xbf16>
    %c2_70 = arith.constant 2 : index
    %c0_71 = arith.constant 0 : index
    %c0_72 = arith.constant 0 : index
    %106 = vector.load %arg11[%c2_70, %c0_71, %c0_72] : memref<4x16x8xbf16, #tpu.memory_space<vmem>>, vector<1x16x8xbf16>
    %107 = vector.shape_cast %106 : vector<1x16x8xbf16> to vector<16x8xbf16>
    %cst_73 = arith.constant dense<0.000000e+00> : vector<8x16xf32>
    %108 = tpu.matmul %105, %107, %cst_73 {dimension_numbers = #tpu.dot_dimension_numbers<[1], [1], [0], [0], [0, 0, 1, 0], [], []>} : vector<8x8xbf16>, vector<16x8xbf16>, vector<8x16xf32> -> vector<8x16xf32>
    %cst_74 = arith.constant dense<0xFF800000> : vector<8xf32>
    %109 = vector.multi_reduction <maximumf>, %108, %cst_74 [1] : vector<8x16xf32> to vector<8xf32>
    %110 = vector.shape_cast %109 : vector<8xf32> to vector<8x1xf32>
    %111 = vector.broadcast %110 : vector<8x1xf32> to vector<8x16xf32>
    %112 = arith.subf %108, %111 : vector<8x16xf32>
    %113 = math.exp %112 : vector<8x16xf32>
    %cst_75 = arith.constant dense<0.000000e+00> : vector<8xf32>
    %114 = vector.multi_reduction <add>, %113, %cst_75 [1] : vector<8x16xf32> to vector<8xf32>
    %115 = vector.shape_cast %114 : vector<8xf32> to vector<8x1xf32>
    %116 = vector.broadcast %115 : vector<8x1xf32> to vector<8x16xf32>
    %117 = arith.divf %113, %116 : vector<8x16xf32>
    %118 = arith.truncf %117 : vector<8x16xf32> to vector<8x16xbf16>
    %c2_76 = arith.constant 2 : index
    %c0_77 = arith.constant 0 : index
    %c0_78 = arith.constant 0 : index
    %119 = vector.load %arg12[%c2_76, %c0_77, %c0_78] : memref<4x16x8xbf16, #tpu.memory_space<vmem>>, vector<1x16x8xbf16>
    %120 = vector.shape_cast %119 : vector<1x16x8xbf16> to vector<16x8xbf16>
    %cst_79 = arith.constant dense<0.000000e+00> : vector<8x8xf32>
    %121 = tpu.matmul %118, %120, %cst_79 {dimension_numbers = #tpu.dot_dimension_numbers<[1], [0], [0], [1], [0, 0, 1, 1], [], []>} : vector<8x16xbf16>, vector<16x8xbf16>, vector<8x8xf32> -> vector<8x8xf32>
    %122 = arith.truncf %121 : vector<8x8xf32> to vector<8x8xbf16>
    %c2_80 = arith.constant 2 : index
    %c0_81 = arith.constant 0 : index
    %c0_82 = arith.constant 0 : index
    %123 = vector.load %arg4[%c2_80, %c0_81, %c0_82] : memref<4x8x32xbf16, #tpu.memory_space<vmem>>, vector<1x8x32xbf16>
    %124 = vector.shape_cast %123 : vector<1x8x32xbf16> to vector<8x32xbf16>
    %cst_83 = arith.constant dense<0.000000e+00> : vector<8x32xf32>
    %125 = tpu.matmul %122, %124, %cst_83 {dimension_numbers = #tpu.dot_dimension_numbers<[1], [0], [0], [1], [0, 0, 1, 1], [], []>} : vector<8x8xbf16>, vector<8x32xbf16>, vector<8x32xf32> -> vector<8x32xf32>
    %126 = arith.addf %97, %125 : vector<8x32xf32>
    %c0_84 = arith.constant 0 : index
    %c3_85 = arith.constant 3 : index
    %c0_86 = arith.constant 0 : index
    %c0_87 = arith.constant 0 : index
    %127 = vector.load %arg3[%c0_84, %c3_85, %c0_86, %c0_87] : memref<3x4x32x8xbf16, #tpu.memory_space<vmem>>, vector<1x1x32x8xbf16>
    %128 = vector.shape_cast %127 : vector<1x1x32x8xbf16> to vector<32x8xbf16>
    %cst_88 = arith.constant dense<0.000000e+00> : vector<8x8xf32>
    %129 = tpu.matmul %38, %128, %cst_88 {dimension_numbers = #tpu.dot_dimension_numbers<[1], [0], [0], [1], [0, 0, 1, 1], [], []>} : vector<8x32xbf16>, vector<32x8xbf16>, vector<8x8xf32> -> vector<8x8xf32>
    %c0_89 = arith.constant 0 : index
    %c3_90 = arith.constant 3 : index
    %c0_91 = arith.constant 0 : index
    %c0_92 = arith.constant 0 : index
    %130 = vector.load %arg7[%c0_89, %c3_90, %c0_91, %c0_92] : memref<3x4x1x8xf32, #tpu.memory_space<vmem>>, vector<1x1x1x8xf32>
    %131 = vector.shape_cast %130 : vector<1x1x1x8xf32> to vector<1x8xf32>
    %132 = vector.broadcast %131 : vector<1x8xf32> to vector<8x8xf32>
    %133 = arith.addf %129, %132 : vector<8x8xf32>
    %134 = arith.truncf %133 : vector<8x8xf32> to vector<8x8xbf16>
    %c3_93 = arith.constant 3 : index
    %c0_94 = arith.constant 0 : index
    %c0_95 = arith.constant 0 : index
    %135 = vector.load %arg11[%c3_93, %c0_94, %c0_95] : memref<4x16x8xbf16, #tpu.memory_space<vmem>>, vector<1x16x8xbf16>
    %136 = vector.shape_cast %135 : vector<1x16x8xbf16> to vector<16x8xbf16>
    %cst_96 = arith.constant dense<0.000000e+00> : vector<8x16xf32>
    %137 = tpu.matmul %134, %136, %cst_96 {dimension_numbers = #tpu.dot_dimension_numbers<[1], [1], [0], [0], [0, 0, 1, 0], [], []>} : vector<8x8xbf16>, vector<16x8xbf16>, vector<8x16xf32> -> vector<8x16xf32>
    %cst_97 = arith.constant dense<0xFF800000> : vector<8xf32>
    %138 = vector.multi_reduction <maximumf>, %137, %cst_97 [1] : vector<8x16xf32> to vector<8xf32>
    %139 = vector.shape_cast %138 : vector<8xf32> to vector<8x1xf32>
    %140 = vector.broadcast %139 : vector<8x1xf32> to vector<8x16xf32>
    %141 = arith.subf %137, %140 : vector<8x16xf32>
    %142 = math.exp %141 : vector<8x16xf32>
    %cst_98 = arith.constant dense<0.000000e+00> : vector<8xf32>
    %143 = vector.multi_reduction <add>, %142, %cst_98 [1] : vector<8x16xf32> to vector<8xf32>
    %144 = vector.shape_cast %143 : vector<8xf32> to vector<8x1xf32>
    %145 = vector.broadcast %144 : vector<8x1xf32> to vector<8x16xf32>
    %146 = arith.divf %142, %145 : vector<8x16xf32>
    %147 = arith.truncf %146 : vector<8x16xf32> to vector<8x16xbf16>
    %c3_99 = arith.constant 3 : index
    %c0_100 = arith.constant 0 : index
    %c0_101 = arith.constant 0 : index
    %148 = vector.load %arg12[%c3_99, %c0_100, %c0_101] : memref<4x16x8xbf16, #tpu.memory_space<vmem>>, vector<1x16x8xbf16>
    %149 = vector.shape_cast %148 : vector<1x16x8xbf16> to vector<16x8xbf16>
    %cst_102 = arith.constant dense<0.000000e+00> : vector<8x8xf32>
    %150 = tpu.matmul %147, %149, %cst_102 {dimension_numbers = #tpu.dot_dimension_numbers<[1], [0], [0], [1], [0, 0, 1, 1], [], []>} : vector<8x16xbf16>, vector<16x8xbf16>, vector<8x8xf32> -> vector<8x8xf32>
    %151 = arith.truncf %150 : vector<8x8xf32> to vector<8x8xbf16>
    %c3_103 = arith.constant 3 : index
    %c0_104 = arith.constant 0 : index
    %c0_105 = arith.constant 0 : index
    %152 = vector.load %arg4[%c3_103, %c0_104, %c0_105] : memref<4x8x32xbf16, #tpu.memory_space<vmem>>, vector<1x8x32xbf16>
    %153 = vector.shape_cast %152 : vector<1x8x32xbf16> to vector<8x32xbf16>
    %cst_106 = arith.constant dense<0.000000e+00> : vector<8x32xf32>
    %154 = tpu.matmul %151, %153, %cst_106 {dimension_numbers = #tpu.dot_dimension_numbers<[1], [0], [0], [1], [0, 0, 1, 1], [], []>} : vector<8x8xbf16>, vector<8x32xbf16>, vector<8x32xf32> -> vector<8x32xf32>
    %155 = arith.addf %126, %154 : vector<8x32xf32>
    %156 = vector.broadcast %4 : vector<1x32xf32> to vector<8x32xf32>
    %157 = arith.addf %155, %156 : vector<8x32xf32>
    %158 = arith.addf %13, %157 : vector<8x32xf32>
    %cst_107 = arith.constant dense<0.000000e+00> : vector<8xf32>
    %159 = vector.multi_reduction <add>, %158, %cst_107 [1] : vector<8x32xf32> to vector<8xf32>
    %160 = vector.shape_cast %159 : vector<8xf32> to vector<8x1xf32>
    %cst_108 = arith.constant 3.200000e+01 : f32
    %161 = vector.broadcast %cst_108 : f32 to vector<8x1xf32>
    %162 = arith.divf %160, %161 : vector<8x1xf32>
    %163 = arith.mulf %158, %158 : vector<8x32xf32>
    %cst_109 = arith.constant dense<0.000000e+00> : vector<8xf32>
    %164 = vector.multi_reduction <add>, %163, %cst_109 [1] : vector<8x32xf32> to vector<8xf32>
    %165 = vector.shape_cast %164 : vector<8xf32> to vector<8x1xf32>
    %cst_110 = arith.constant 3.200000e+01 : f32
    %166 = vector.broadcast %cst_110 : f32 to vector<8x1xf32>
    %167 = arith.divf %165, %166 : vector<8x1xf32>
    %168 = arith.mulf %162, %162 : vector<8x1xf32>
    %169 = arith.subf %167, %168 : vector<8x1xf32>
    %cst_111 = arith.constant 0.000000e+00 : f32
    %170 = vector.broadcast %cst_111 : f32 to vector<8x1xf32>
    %171 = arith.maximumf %169, %170 : vector<8x1xf32>
    %172 = vector.broadcast %162 : vector<8x1xf32> to vector<8x32xf32>
    %173 = arith.subf %158, %172 : vector<8x32xf32>
    %cst_112 = arith.constant 9.99999997E-7 : f32
    %174 = vector.broadcast %cst_112 : f32 to vector<8x1xf32>
    %175 = arith.addf %171, %174 : vector<8x1xf32>
    %176 = math.rsqrt %175 : vector<8x1xf32>
    %177 = vector.broadcast %176 : vector<8x1xf32> to vector<8x32xf32>
    %178 = arith.mulf %173, %177 : vector<8x32xf32>
    %179 = vector.broadcast %2 : vector<1x32xf32> to vector<8x32xf32>
    %180 = arith.mulf %178, %179 : vector<8x32xf32>
    %181 = vector.broadcast %3 : vector<1x32xf32> to vector<8x32xf32>
    %182 = arith.addf %180, %181 : vector<8x32xf32>
    %183 = arith.truncf %182 : vector<8x32xf32> to vector<8x32xbf16>
    %c0_113 = arith.constant 0 : index
    %c0_114 = arith.constant 0 : index
    %184 = vector.load %arg5[%c0_113, %c0_114] : memref<32x64xbf16, #tpu.memory_space<vmem>>, vector<32x64xbf16>
    %cst_115 = arith.constant dense<0.000000e+00> : vector<8x64xf32>
    %185 = tpu.matmul %183, %184, %cst_115 {dimension_numbers = #tpu.dot_dimension_numbers<[1], [0], [0], [1], [0, 0, 1, 1], [], []>} : vector<8x32xbf16>, vector<32x64xbf16>, vector<8x64xf32> -> vector<8x64xf32>
    %c0_116 = arith.constant 0 : index
    %c0_117 = arith.constant 0 : index
    %186 = vector.load %arg8[%c0_116, %c0_117] : memref<1x64xf32, #tpu.memory_space<vmem>>, vector<1x64xf32>
    %187 = vector.broadcast %186 : vector<1x64xf32> to vector<8x64xf32>
    %188 = arith.addf %185, %187 : vector<8x64xf32>
    %cst_118 = arith.constant 5.000000e-01 : f32
    %189 = vector.broadcast %cst_118 : f32 to vector<8x64xf32>
    %190 = arith.mulf %189, %188 : vector<8x64xf32>
    %cst_119 = arith.constant 4.471500e-02 : f32
    %191 = vector.broadcast %cst_119 : f32 to vector<8x64xf32>
    %192 = arith.mulf %191, %188 : vector<8x64xf32>
    %193 = arith.mulf %192, %188 : vector<8x64xf32>
    %194 = arith.mulf %193, %188 : vector<8x64xf32>
    %195 = arith.addf %188, %194 : vector<8x64xf32>
    %cst_120 = arith.constant 0.797884583 : f32
    %196 = vector.broadcast %cst_120 : f32 to vector<8x64xf32>
    %197 = arith.mulf %196, %195 : vector<8x64xf32>
    %198 = math.tanh %197 : vector<8x64xf32>
    %cst_121 = arith.constant 1.000000e+00 : f32
    %199 = vector.broadcast %cst_121 : f32 to vector<8x64xf32>
    %200 = arith.addf %199, %198 : vector<8x64xf32>
    %201 = arith.mulf %190, %200 : vector<8x64xf32>
    %202 = arith.truncf %201 : vector<8x64xf32> to vector<8x64xbf16>
    %c0_122 = arith.constant 0 : index
    %c0_123 = arith.constant 0 : index
    %203 = vector.load %arg6[%c0_122, %c0_123] : memref<64x32xbf16, #tpu.memory_space<vmem>>, vector<64x32xbf16>
    %cst_124 = arith.constant dense<0.000000e+00> : vector<8x32xf32>
    %204 = tpu.matmul %202, %203, %cst_124 {dimension_numbers = #tpu.dot_dimension_numbers<[1], [0], [0], [1], [0, 0, 1, 1], [], []>} : vector<8x64xbf16>, vector<64x32xbf16>, vector<8x32xf32> -> vector<8x32xf32>
    %205 = vector.broadcast %5 : vector<1x32xf32> to vector<8x32xf32>
    %206 = arith.addf %204, %205 : vector<8x32xf32>
    %207 = arith.addf %158, %206 : vector<8x32xf32>
    %c0_125 = arith.constant 0 : index
    %c0_126 = arith.constant 0 : index
    %c0_127 = arith.constant 0 : index
    %208 = vector.load %arg10[%c0_125, %c0_126, %c0_127] : memref<1x8x32xf32, #tpu.memory_space<vmem>>, vector<1x8x32xf32>
    %209 = vector.shape_cast %208 : vector<1x8x32xf32> to vector<8x32xf32>
    %210 = vector.shape_cast %207 : vector<8x32xf32> to vector<1x8x32xf32>
    tpu.vector_store %arg10[%c0_125, %c0_126, %c0_127], %210 {strides = array<i32>} : memref<1x8x32xf32, #tpu.memory_space<vmem>>, vector<1x8x32xf32>,
    return
  }
  func.func @transform_0(%arg0: i32, %arg1: i32) -> (i32, i32, i32) {
    %c0_i32 = arith.constant 0 : i32
    %c0_i32_0 = arith.constant 0 : i32
    %c0_i32_1 = arith.constant 0 : i32
    return %arg0, %c0_i32, %c0_i32_0 : i32, i32, i32
  }
  func.func @transform_1(%arg0: i32, %arg1: i32) -> (i32, i32, i32, i32) {
    %c0_i32 = arith.constant 0 : i32
    %c0_i32_0 = arith.constant 0 : i32
    %c0_i32_1 = arith.constant 0 : i32
    %c0_i32_2 = arith.constant 0 : i32
    %c0_i32_3 = arith.constant 0 : i32
    return %c0_i32, %c0_i32_0, %c0_i32_1, %c0_i32_2 : i32, i32, i32, i32
  }
  func.func @transform_2(%arg0: i32, %arg1: i32) -> (i32, i32, i32) {
    %c0_i32 = arith.constant 0 : i32
    %c0_i32_0 = arith.constant 0 : i32
    %c0_i32_1 = arith.constant 0 : i32
    %c0_i32_2 = arith.constant 0 : i32
    return %c0_i32, %c0_i32_0, %c0_i32_1 : i32, i32, i32
  }
  func.func @transform_3(%arg0: i32, %arg1: i32) -> (i32, i32) {
    %c0_i32 = arith.constant 0 : i32
    %c0_i32_0 = arith.constant 0 : i32
    %c0_i32_1 = arith.constant 0 : i32
    return %c0_i32, %c0_i32_0 : i32, i32
  }
  func.func @transform_4(%arg0: i32, %arg1: i32) -> (i32, i32) {
    %c0_i32 = arith.constant 0 : i32
    %c0_i32_0 = arith.constant 0 : i32
    %c0_i32_1 = arith.constant 0 : i32
    return %c0_i32, %c0_i32_0 : i32, i32
  }
  func.func @transform_5(%arg0: i32, %arg1: i32) -> (i32, i32, i32, i32) {
    %c0_i32 = arith.constant 0 : i32
    %c0_i32_0 = arith.constant 0 : i32
    %c0_i32_1 = arith.constant 0 : i32
    %c0_i32_2 = arith.constant 0 : i32
    %c0_i32_3 = arith.constant 0 : i32
    return %c0_i32, %c0_i32_0, %c0_i32_1, %c0_i32_2 : i32, i32, i32, i32
  }
  func.func @transform_6(%arg0: i32, %arg1: i32) -> (i32, i32) {
    %c0_i32 = arith.constant 0 : i32
    %c0_i32_0 = arith.constant 0 : i32
    %c0_i32_1 = arith.constant 0 : i32
    return %c0_i32, %c0_i32_0 : i32, i32
  }
  func.func @transform_7(%arg0: i32, %arg1: i32) -> (i32, i32) {
    %c0_i32 = arith.constant 0 : i32
    %c0_i32_0 = arith.constant 0 : i32
    %c0_i32_1 = arith.constant 0 : i32
    return %c0_i32, %c0_i32_0 : i32, i32
  }
  func.func @transform_8(%arg0: i32, %arg1: i32) -> (i32, i32, i32) {
    %c0_i32 = arith.constant 0 : i32
    %c0_i32_0 = arith.constant 0 : i32
    return %arg0, %arg1, %c0_i32 : i32, i32, i32
  }
}

</mosaic_0001>

<llo_original>
// kernel: tpu_custom_call.1
$region0: #{tpu_custom_call.1}
  #allocation0 [shape = 'u32[]', space=smem, size = 0x4, offset = 0x4, fixed_abs, tag = 'smem constant byte address 0x4 - core index']
  #allocation1 [shape = 'u32[144,128]{1,0:T(1,128)}', space=vmem, size = 0x12000, scoped, tag = 'internal scratch']
  #allocation2 [shape = 'bf16[4,16,8]{2,1,0:T(16,128)(2,1)}', space=vmem, size = 0x4000, scoped, tag = 'scratch operand']
  #allocation3 [shape = 'bf16[4,16,8]{2,1,0:T(16,128)(2,1)}', space=vmem, size = 0x4000, scoped, tag = 'scratch operand']
  %s0 = inlined_call_operand.vmem [shape: f32[2,16,32], index: 0, kind: input, shape index: {}]
  %s1 = inlined_call_operand.vmem [shape: bf16[3,4,32,8], index: 1, kind: input, shape index: {}]
  %s2 = inlined_call_operand.vmem [shape: bf16[4,8,32], index: 2, kind: input, shape index: {}]
  %s3 = inlined_call_operand.vmem [shape: bf16[32,64], index: 3, kind: input, shape index: {}]
  %s4 = inlined_call_operand.vmem [shape: bf16[64,32], index: 4, kind: input, shape index: {}]
  %s5 = inlined_call_operand.vmem [shape: f32[3,4,1,8], index: 5, kind: input, shape index: {}]
  %s6 = inlined_call_operand.vmem [shape: f32[1,64], index: 6, kind: input, shape index: {}]
  %s7 = inlined_call_operand.vmem [shape: f32[6,32], index: 7, kind: input, shape index: {}]
  %s8 = inlined_call_operand.hbm [shape: f32[2,16,32], index: 8, kind: output, shape index: {}]
  %s9 = sld [smem:[#allocation0]]
  $region69: #{tpu_custom_call.1} parent=0
    _
  %s11 = ssub.s32 1, %s9
  %s12 = scalar_select 0, %s11, %s9
  $region1: #{tpu_custom_call.1} parent=0
    #allocation4 [shape = 'u8[8192]{0}', space=vmem, size = 0x2000, scoped, tag = 'output window, operand 0']
    #allocation5 [shape = 's32[2]{0}', space=sflag, size = 0x8, scoped, tag = 'scoped memory for tpu_custom_call.1']
    %13 = vsyncpa [#allocation5], 0
    %s14 = scalar_lea.sflag [#allocation5], 1
    %15 = vsyncpa %s14, 0
    loop: start=0, step=1, limit=6
    $region2: #{tpu_custom_call.1} parent=1 // loop_pre_header
      _
    $region3: #{tpu_custom_call.1} parent=1 // loop_header
      %s17 = sphi 0, %s21
      %p18 = scmp.ge.s32.totalorder %s17, 6
      %s24 = sphi 0, %s36
      %s25 = sphi 0, %s32
      %s26 = sphi 0, %s24
      %s27 = sphi 0, %s25
      %s28 = sphi 0, %s26
      %s29 = sphi 0, %s27
      %s39 = sphi 0, %s41
      %s42 = sphi 0, %s39
      %s43 = sphi 0, %s42
      %s59 = sphi 0, %s43
      %s63 = sphi 0, %s63
      %s65 = sphi 0, %s63
      %s66 = sphi 0, %s65
      %s80 = sphi 0, %s66
      %s84 = sphi 0, %s84
      %s86 = sphi 0, %s84
      %s87 = sphi 0, %s86
      %s101 = sphi 0, %s87
      %s105 = sphi 0, %s105
      %s107 = sphi 0, %s105
      %s108 = sphi 0, %s107
      %s122 = sphi 0, %s108
      %s126 = sphi 0, %s126
      %s128 = sphi 0, %s126
      %s129 = sphi 0, %s128
      %s143 = sphi 0, %s129
      %s147 = sphi 0, %s147
      %s149 = sphi 0, %s147
      %s150 = sphi 0, %s149
      %s164 = sphi 0, %s150
      %s168 = sphi 0, %s168
      %s170 = sphi 0, %s168
      %s171 = sphi 0, %s170
      %s185 = sphi 0, %s171
      %s189 = sphi 0, %s189
      %s191 = sphi 0, %s189
      %s192 = sphi 0, %s191
      %s206 = sphi 0, %s192
      %s214 = sphi 0, %s216
      %s217 = sphi 0, %s214
      %s218 = sphi 0, %s217
      %s234 = sphi 0, %s218
    $region4: #{tpu_custom_call.1} parent=1 // loop_header_branch
      %20 = sbr.rel (%p18) target = $region8
    $region5: #{tpu_custom_call.1} parent=1 // loop_body
      %s22 = ssub.s32 %s17, 1
      %s23 = ssub.s32 %s17, 2
      %s30 = sadd.s32 1, %s25
      %p31 = scmp.ge.s32.totalorder %s30, 2
      %s32 = scalar_select %p31, 0, %s30
      %s33 = sadd.s32 1, %s24
      %s34 = scalar_select %p31, %s33, %s24
      %p35 = scmp.ge.s32.totalorder %s34, 2
      %s36 = scalar_select %p35, 0, %s34
      %s37 = ssub.s32 %s24, %s36
      %p38 = scmp.eq.s32.totalorder %s37, 0
      %s40 = sadd.s32 %s39, 1
      %s41 = scalar_select %p38, %s39, %s40
      %p44 = pneg %p38
      %p45 = scmp.eq.s32.totalorder %s17, 3
      %p46 = por %p44, %p45
      %p47 = scmp.ne.s32.totalorder %s39, %s42
      %p48 = scmp.eq.s32.totalorder %s17, 0
      %p49 = por %p47, %p48
      %p50 = scmp.ne.s32.totalorder %s39, %s42
      %p51 = scmp.eq.s32.totalorder %s22, 3
      %p52 = por %p50, %p51
      %p53 = scmp.ne.s32.totalorder %s42, %s43
      %p54 = scmp.eq.s32.totalorder %s22, 0
      %p55 = por %p53, %p54
      %p56 = scmp.ne.s32.totalorder %s42, %s43
      %p57 = scmp.eq.s32.totalorder %s23, 3
      %p58 = por %p56, %p57
      %p60 = scmp.ne.s32.totalorder %s43, %s59
      %p61 = scmp.eq.s32.totalorder %s23, 0
      %p62 = por %p60, %p61
      %s64 = sadd.s32 %s63, 1
      %p67 = scmp.eq.s32.totalorder %s17, 3
      %p68 = scmp.ne.s32.totalorder %s63, %s65
      %p69 = scmp.eq.s32.totalorder %s17, 0
      %p70 = por %p68, %p69
      %p71 = scmp.ne.s32.totalorder %s63, %s65
      %p72 = scmp.eq.s32.totalorder %s22, 3
      %p73 = por %p71, %p72
      %p74 = scmp.ne.s32.totalorder %s65, %s66
      %p75 = scmp.eq.s32.totalorder %s22, 0
      %p76 = por %p74, %p75
      %p77 = scmp.ne.s32.totalorder %s65, %s66
      %p78 = scmp.eq.s32.totalorder %s23, 3
      %p79 = por %p77, %p78
      %p81 = scmp.ne.s32.totalorder %s66, %s80
      %p82 = scmp.eq.s32.totalorder %s23, 0
      %p83 = por %p81, %p82
      %s85 = sadd.s32 %s84, 1
      %p88 = scmp.eq.s32.totalorder %s17, 3
      %p89 = scmp.ne.s32.totalorder %s84, %s86
      %p90 = scmp.eq.s32.totalorder %s17, 0
      %p91 = por %p89, %p90
      %p92 = scmp.ne.s32.totalorder %s84, %s86
      %p93 = scmp.eq.s32.totalorder %s22, 3
      %p94 = por %p92, %p93
      %p95 = scmp.ne.s32.totalorder %s86, %s87
      %p96 = scmp.eq.s32.totalorder %s22, 0
      %p97 = por %p95, %p96
      %p98 = scmp.ne.s32.totalorder %s86, %s87
      %p99 = scmp.eq.s32.totalorder %s23, 3
      %p100 = por %p98, %p99
      %p102 = scmp.ne.s32.totalorder %s87, %s101
      %p103 = scmp.eq.s32.totalorder %s23, 0
      %p104 = por %p102, %p103
      %s106 = sadd.s32 %s105, 1
      %p109 = scmp.eq.s32.totalorder %s17, 3
      %p110 = scmp.ne.s32.totalorder %s105, %s107
      %p111 = scmp.eq.s32.totalorder %s17, 0
      %p112 = por %p110, %p111
      %p113 = scmp.ne.s32.totalorder %s105, %s107
      %p114 = scmp.eq.s32.totalorder %s22, 3
      %p115 = por %p113, %p114
      %p116 = scmp.ne.s32.totalorder %s107, %s108
      %p117 = scmp.eq.s32.totalorder %s22, 0
      %p118 = por %p116, %p117
      %p119 = scmp.ne.s32.totalorder %s107, %s108
      %p120 = scmp.eq.s32.totalorder %s23, 3
      %p121 = por %p119, %p120
      %p123 = scmp.ne.s32.totalorder %s108, %s122
      %p124 = scmp.eq.s32.totalorder %s23, 0
      %p125 = por %p123, %p124
      %s127 = sadd.s32 %s126, 1
      %p130 = scmp.eq.s32.totalorder %s17, 3
      %p131 = scmp.ne.s32.totalorder %s126, %s128
      %p132 = scmp.eq.s32.totalorder %s17, 0
      %p133 = por %p131, %p132
      %p134 = scmp.ne.s32.totalorder %s126, %s128
      %p135 = scmp.eq.s32.totalorder %s22, 3
      %p136 = por %p134, %p135
      %p137 = scmp.ne.s32.totalorder %s128, %s129
      %p138 = scmp.eq.s32.totalorder %s22, 0
      %p139 = por %p137, %p138
      %p140 = scmp.ne.s32.totalorder %s128, %s129
      %p141 = scmp.eq.s32.totalorder %s23, 3
      %p142 = por %p140, %p141
      %p144 = scmp.ne.s32.totalorder %s129, %s143
      %p145 = scmp.eq.s32.totalorder %s23, 0
      %p146 = por %p144, %p145
      %s148 = sadd.s32 %s147, 1
      %p151 = scmp.eq.s32.totalorder %s17, 3
      %p152 = scmp.ne.s32.totalorder %s147, %s149
      %p153 = scmp.eq.s32.totalorder %s17, 0
      %p154 = por %p152, %p153
      %p155 = scmp.ne.s32.totalorder %s147, %s149
      %p156 = scmp.eq.s32.totalorder %s22, 3
      %p157 = por %p155, %p156
      %p158 = scmp.ne.s32.totalorder %s149, %s150
      %p159 = scmp.eq.s32.totalorder %s22, 0
      %p160 = por %p158, %p159
      %p161 = scmp.ne.s32.totalorder %s149, %s150
      %p162 = scmp.eq.s32.totalorder %s23, 3
      %p163 = por %p161, %p162
      %p165 = scmp.ne.s32.totalorder %s150, %s164
      %p166 = scmp.eq.s32.totalorder %s23, 0
      %p167 = por %p165, %p166
      %s169 = sadd.s32 %s168, 1
      %p172 = scmp.eq.s32.totalorder %s17, 3
      %p173 = scmp.ne.s32.totalorder %s168, %s170
      %p174 = scmp.eq.s32.totalorder %s17, 0
      %p175 = por %p173, %p174
      %p176 = scmp.ne.s32.totalorder %s168, %s170
      %p177 = scmp.eq.s32.totalorder %s22, 3
      %p178 = por %p176, %p177
      %p179 = scmp.ne.s32.totalorder %s170, %s171
      %p180 = scmp.eq.s32.totalorder %s22, 0
      %p181 = por %p179, %p180
      %p182 = scmp.ne.s32.totalorder %s170, %s171
      %p183 = scmp.eq.s32.totalorder %s23, 3
      %p184 = por %p182, %p183
      %p186 = scmp.ne.s32.totalorder %s171, %s185
      %p187 = scmp.eq.s32.totalorder %s23, 0
      %p188 = por %p186, %p187
      %s190 = sadd.s32 %s189, 1
      %p193 = scmp.eq.s32.totalorder %s17, 3
      %p194 = scmp.ne.s32.totalorder %s189, %s191
      %p195 = scmp.eq.s32.totalorder %s17, 0
      %p196 = por %p194, %p195
      %p197 = scmp.ne.s32.totalorder %s189, %s191
      %p198 = scmp.eq.s32.totalorder %s22, 3
      %p199 = por %p197, %p198
      %p200 = scmp.ne.s32.totalorder %s191, %s192
      %p201 = scmp.eq.s32.totalorder %s22, 0
      %p202 = por %p200, %p201
      %p203 = scmp.ne.s32.totalorder %s191, %s192
      %p204 = scmp.eq.s32.totalorder %s23, 3
      %p205 = por %p203, %p204
      %p207 = scmp.ne.s32.totalorder %s192, %s206
      %p208 = scmp.eq.s32.totalorder %s23, 0
      %p209 = por %p207, %p208
      %s210 = ssub.s32 %s24, %s36
      %s211 = ssub.s32 %s25, %s32
      %s212 = sor.u32 %s210, %s211
      %p213 = scmp.eq.s32.totalorder %s212, 0
      %s215 = sadd.s32 %s214, 1
      %s216 = scalar_select %p213, %s214, %s215
      %p219 = pneg %p213
      %p220 = scmp.eq.s32.totalorder %s17, 3
      %p221 = por %p219, %p220
      %p222 = scmp.ne.s32.totalorder %s214, %s217
      %p223 = scmp.eq.s32.totalorder %s17, 0
      %p224 = por %p222, %p223
      %p225 = scmp.ne.s32.totalorder %s214, %s217
      %p226 = scmp.eq.s32.totalorder %s22, 3
      %p227 = por %p225, %p226
      %p228 = scmp.ne.s32.totalorder %s217, %s218
      %p229 = scmp.eq.s32.totalorder %s22, 0
      %p230 = por %p228, %p229
      %p231 = scmp.ne.s32.totalorder %s217, %s218
      %p232 = scmp.eq.s32.totalorder %s23, 3
      %p233 = por %p231, %p232
      %p235 = scmp.ne.s32.totalorder %s218, %s234
      %p236 = scmp.eq.s32.totalorder %s23, 0
      %p237 = por %p235, %p236
      %p238 = scmp.le.s32.totalorder 1, %s17
      %p239 = scmp.lt.s32.totalorder %s17, 5
      %p240 = pnand %p238, %p239
      %p241 = pneg %p240
      // Predicated region
      $region9: #{tpu_custom_call.1} parent=5 // pred_check
        _
      $region10: #{tpu_custom_call.1} parent=5 // pred_check_branch
        %243 = sbr.rel (%p240) target = $region12
      $region11: #{tpu_custom_call.1} parent=5 // pred_region
        %s244 = ssub.s32 %s17, 1
        // Predicated region
        $region13: #{tpu_custom_call.1} parent=11 // pred_check
          %p245 = pneg %p76
        $region14: #{tpu_custom_call.1} parent=11 // pred_check_branch
          %247 = sbr.rel (%p245) target = $region16
        $region15: #{tpu_custom_call.1} parent=11 // pred_region
          _
        $region16: #{tpu_custom_call.1} parent=11 // pred_fallthru
          _
        // Predicated region
        $region17: #{tpu_custom_call.1} parent=11 // pred_check
          %p248 = pneg %p97
        $region18: #{tpu_custom_call.1} parent=11 // pred_check_branch
          %250 = sbr.rel (%p248) target = $region20
        $region19: #{tpu_custom_call.1} parent=11 // pred_region
          _
        $region20: #{tpu_custom_call.1} parent=11 // pred_fallthru
          _
        // Predicated region
        $region21: #{tpu_custom_call.1} parent=11 // pred_check
          %p251 = pneg %p118
        $region22: #{tpu_custom_call.1} parent=11 // pred_check_branch
          %253 = sbr.rel (%p251) target = $region24
        $region23: #{tpu_custom_call.1} parent=11 // pred_region
          _
        $region24: #{tpu_custom_call.1} parent=11 // pred_fallthru
          _
        // Predicated region
        $region25: #{tpu_custom_call.1} parent=11 // pred_check
          %p254 = pneg %p139
        $region26: #{tpu_custom_call.1} parent=11 // pred_check_branch
          %256 = sbr.rel (%p254) target = $region28
        $region27: #{tpu_custom_call.1} parent=11 // pred_region
          _
        $region28: #{tpu_custom_call.1} parent=11 // pred_fallthru
          _
        // Predicated region
        $region29: #{tpu_custom_call.1} parent=11 // pred_check
          %p257 = pneg %p160
        $region30: #{tpu_custom_call.1} parent=11 // pred_check_branch
          %259 = sbr.rel (%p257) target = $region32
        $region31: #{tpu_custom_call.1} parent=11 // pred_region
          _
        $region32: #{tpu_custom_call.1} parent=11 // pred_fallthru
          _
        // Predicated region
        $region33: #{tpu_custom_call.1} parent=11 // pred_check
          %p260 = pneg %p181
        $region34: #{tpu_custom_call.1} parent=11 // pred_check_branch
          %262 = sbr.rel (%p260) target = $region36
        $region35: #{tpu_custom_call.1} parent=11 // pred_region
          _
        $region36: #{tpu_custom_call.1} parent=11 // pred_fallthru
          _
        // Predicated region
        $region37: #{tpu_custom_call.1} parent=11 // pred_check
          %p263 = pneg %p202
        $region38: #{tpu_custom_call.1} parent=11 // pred_check_branch
          %265 = sbr.rel (%p263) target = $region40
        $region39: #{tpu_custom_call.1} parent=11 // pred_region
          _
        $region40: #{tpu_custom_call.1} parent=11 // pred_fallthru
          _
      $region12: #{tpu_custom_call.1} parent=5 // pred_fallthru
        _
      %p266 = scmp.lt.s32.totalorder %s17, 4
      // Predicated region
      $region41: #{tpu_custom_call.1} parent=5 // pred_check
        %p267 = pneg %p266
      $region42: #{tpu_custom_call.1} parent=5 // pred_check_branch
        %269 = sbr.rel (%p267) target = $region44
      $region43: #{tpu_custom_call.1} parent=5 // pred_region
        // Predicated region
        $region45: #{tpu_custom_call.1} parent=43 // pred_check
          %p270 = pneg %p49
        $region46: #{tpu_custom_call.1} parent=43 // pred_check_branch
          %272 = sbr.rel (%p270) target = $region48
        $region47: #{tpu_custom_call.1} parent=43 // pred_region
          %p273 = scmp.lt.s32.totalorder %s24, 1
          %s274 = scalar_select %p273, %s24, 1
          %s275 = smul.addr %s274, 2
          %s276 = smul.addr %s275, 8
          %s277 = scalar_lea.vmem %s0, %s276
        $region48: #{tpu_custom_call.1} parent=43 // pred_fallthru
          _
      $region44: #{tpu_custom_call.1} parent=5 // pred_fallthru
        _
      %p278 = scmp.le.s32.totalorder 1, %s17
      %p279 = scmp.lt.s32.totalorder %s17, 5
      %p280 = pnand %p278, %p279
      %p281 = pneg %p280
      // Predicated region
      $region49: #{tpu_custom_call.1} parent=5 // pred_check
        _
      $region50: #{tpu_custom_call.1} parent=5 // pred_check_branch
        %283 = sbr.rel (%p280) target = $region52
      $region51: #{tpu_custom_call.1} parent=5 // pred_region
        %s284 = ssub.s32 %s17, 1
        %p285 = scmp.lt.s32.totalorder %s26, 1
        %s286 = scalar_select %p285, %s26, 1
        %s287 = smul.addr %s286, 2
        %s288 = smul.addr %s287, 8
        %s289 = scalar_lea.vmem %s0, %s288
        %p290 = pneg %p55
        %p291 = pneg %p52
        %p292 = pneg %p76
        %p293 = pneg %p73
        %p294 = pneg %p97
        %p295 = pneg %p94
        %p296 = pneg %p118
        %p297 = pneg %p115
        %p298 = pneg %p139
        %p299 = pneg %p136
        %p300 = pneg %p160
        %p301 = pneg %p157
        %p302 = pneg %p181
        %p303 = pneg %p178
        %p304 = pneg %p202
        %p305 = pneg %p199
        %p306 = pneg %p230
        %p307 = pneg %p227
        %s308 = sand.u32 %s217, 1
        %s309 = scalar_lea.sflag [#allocation5], %s308
        %s310 = sand.u32 %s217, 1
        %s311 = smul.addr %s310, 8
        %s312 = scalar_lea.vmem [#allocation4], %s311
        %p313 = scmp.lt.s32.totalorder %s26, 1
        %s314 = scalar_select %p313, %s26, 1
        %s315 = smul.addr %s314, 2
        %s316 = smul.addr %s315, 8
        %s317 = scalar_lea.vmem %s0, %s316
        %v319 = vld [vmem:[%s7] sm:$0x1]
        %v320 = vld [vmem:[%s7 + $0x1] sm:$0x1]
        %v321 = vld [vmem:[%s7 + $0x2] sm:$0x1]
        %v322 = vld [vmem:[%s7 + $0x3] sm:$0x1]
        %v323 = vld [vmem:[%s7 + $0x4] sm:$0x1]
        %v324 = vld [vmem:[%s7 + $0x5] sm:$0x1]
        %p325 = scmp.eq.s32.totalorder %s27, 0
        // Predicated region
        $region53: #{tpu_custom_call.1} parent=51 // pred_check
          %p326 = pneg %p325
        $region54: #{tpu_custom_call.1} parent=51 // pred_check_branch
          %328 = sbr.rel (%p326) target = $region56
        $region55: #{tpu_custom_call.1} parent=51 // pred_region
          %v329 = vld [vmem:[%s317] sm:$0xff]
          %v330 = vld [vmem:[%s317 + $0x8] sm:$0xff]
          %vm331 = vcmask 261120
          %v332 = vsel %vm331, %v329, 0.0
          %333 = vadd.xlane.f32.xlu0 %v332
          %v334 = vpop.xlane.xlu0 %333
          %v335 = vsel %vm331, %v330, 0.0
          %336 = vadd.xlane.f32.xlu0 %v335
          %v337 = vpop.xlane.xlu0 %336
          %v338 = vrcp.pop 32.0
          %v339 = vmul.f32 %v334, %v338
          %v340 = vmul.f32 %v337, %v338
          %v341 = vmul.f32 %v329, %v329
          %v342 = vmul.f32 %v330, %v330
          %v343 = vsel %vm331, %v341, 0.0
          %344 = vadd.xlane.f32.xlu0 %v343
          %v345 = vpop.xlane.xlu0 %344
          %v346 = vsel %vm331, %v342, 0.0
          %347 = vadd.xlane.f32.xlu0 %v346
          %v348 = vpop.xlane.xlu0 %347
          %v349 = vmul.f32 %v345, %v338
          %v350 = vmul.f32 %v348, %v338
          %v351 = vmul.f32 %v339, %v339
          %v352 = vmul.f32 %v340, %v340
          %v353 = vsub.f32 %v349, %v351
          %v354 = vsub.f32 %v350, %v352
          %v355 = vmax.f32 %v353, 0.0
          %v356 = vmax.f32 %v354, 0.0
          %v357 = vsub.f32 %v329, %v339
          %v358 = vsub.f32 %v330, %v340
          %v359 = vadd.f32 %v355, 1e-06
          %v360 = vadd.f32 %v356, 1e-06
          %v361 = vrsqrt.pop %v359
          %v362 = vrsqrt.pop %v360
          %v363 = vmul.f32 %v357, %v361
          %v364 = vmul.f32 %v358, %v362
          %v365 = vlaneseq
          %v366 = vshrl.u32 %v365, 7
          %v367 = vsub.s32 0, %v366
          %v368 = vrot.slane %v319, %v367
          %v369 = vmul.f32 %v363, %v368
          %v370 = vmul.f32 %v364, %v368
          %v371 = vlaneseq
          %v372 = vshrl.u32 %v371, 7
          %v373 = vsub.s32 0, %v372
          %v374 = vrot.slane %v320, %v373
          %v375 = vadd.f32 %v369, %v374
          %v376 = vadd.f32 %v370, %v374
          %v377 = vpack.c.bf16 %v376, %v375
          %s378 = scalar_lea.vmem %s1, 64
          %v379 = vld [vmem:[%s378] sm:$0xf]
          %v380 = vld [vmem:[%s378 + $0x4] sm:$0xf]
          %v381 = vld [vmem:[%s378 + $0x8] sm:$0xf]
          %v382 = vld [vmem:[%s378 + $0xc] sm:$0xf]
          %s383 = scalar_lea.vmem %s5, 4
          %v384 = vld [vmem:[%s383] sm:$0x1]
          %v386 = vlaneseq
          %v387 = vshrl.u32 %v386, 7
          %v388 = vsub.s32 0, %v387
          %v389 = vrot.slane %v384, %v388
          %v395 = vunpack.c.l.b16 %v379
          %v396 = vunpack.c.l.b16 %v380
          %v397 = vunpack.c.l.b16 %v381
          %v398 = vunpack.c.l.b16 %v382
          %v399 = vpack.c.b16 %v396, %v395
          %v400 = vpack.c.b16 %v398, %v397
          %v404 = vsel %vm331, %v377, 0
          %406 = vmatprep.subr.bf16.mxu0 0
          %407 = vmatpush1.bf16.msra.mxu0 %v399
          %408 = vmatprep.subr.bf16.mxu0 0
          %409 = vmatpush1.bf16.msra.mxu0 %v400
          %410 = vmatprep.subr.bf16.mxu0 0
          %411 = vmatpush1.bf16.msra.mxu0 0
          %412 = vmatprep.subr.bf16.mxu0 0
          %413 = vmatpush1.bf16.msra.mxu0 0
          %414 = vmatprep.subr.bf16.mxu0 0
          %415 = vmatpush1.bf16.msra.mxu0 0
          %416 = vmatprep.subr.bf16.mxu0 0
          %417 = vmatpush1.bf16.msra.mxu0 0
          %418 = vmatprep.subr.bf16.mxu0 0
          %419 = vmatpush1.bf16.msra.mxu0 0
          %420 = vmatprep.subr.bf16.mxu0 0
          %421 = vmatpush1.bf16.msra.mxu0 0
          %422 = vmatprep.subr.bf16.mxu0 0
          %423 = vmatpush1.bf16.msra.mxu0 0
          %424 = vmatprep.subr.bf16.mxu0 0
          %425 = vmatpush1.bf16.msra.mxu0 0
          %426 = vmatprep.subr.bf16.mxu0 0
          %427 = vmatpush1.bf16.msra.mxu0 0
          %428 = vmatprep.subr.bf16.mxu0 0
          %429 = vmatpush1.bf16.msra.mxu0 0
          %430 = vmatprep.subr.bf16.mxu0 0
          %431 = vmatpush1.bf16.msra.mxu0 0
          %432 = vmatprep.subr.bf16.mxu0 0
          %433 = vmatpush1.bf16.msra.mxu0 0
          %434 = vmatprep.subr.bf16.mxu0 0
          %435 = vmatpush1.bf16.msra.mxu0 0
          %436 = vmatprep.subr.bf16.mxu0 0
          %437 = vmatpush1.bf16.msra.mxu0 0
          %438 = vmatprep.mubr.bf16.mxu0 0
          %439 = vmatmul.mubr.bf16.gmra.mrb[0].mxu0 %v404
          %v440 = vpop.f32.mrb[0].mxu0
          %v441 = vadd.f32 %v389, %v440
          %v442 = vpop.f32.mrb[0].mxu0
          %v443 = vpop.f32.mrb[0].mxu0
          %v444 = vadd.f32 %v389, %v443
          %v445 = vpop.f32.mrb[0].mxu0
          %446 = vdwg.mxu0
          %s447 = scalar_lea.vmem %s1, 128
          %v448 = vld [vmem:[%s447] sm:$0xf]
          %v449 = vld [vmem:[%s447 + $0x4] sm:$0xf]
          %v450 = vld [vmem:[%s447 + $0x8] sm:$0xf]
          %v451 = vld [vmem:[%s447 + $0xc] sm:$0xf]
          %s452 = scalar_lea.vmem %s5, 8
          %v453 = vld [vmem:[%s452] sm:$0x1]
          %v455 = vlaneseq
          %v456 = vshrl.u32 %v455, 7
          %v457 = vsub.s32 0, %v456
          %v458 = vrot.slane %v453, %v457
          %v464 = vunpack.c.l.b16 %v448
          %v465 = vunpack.c.l.b16 %v449
          %v466 = vunpack.c.l.b16 %v450
          %v467 = vunpack.c.l.b16 %v451
          %v468 = vpack.c.b16 %v465, %v464
          %v469 = vpack.c.b16 %v467, %v466
          %472 = vmatprep.subr.bf16.mxu0 0
          %473 = vmatpush1.bf16.msra.mxu0 %v468
          %474 = vmatprep.subr.bf16.mxu0 0
          %475 = vmatpush1.bf16.msra.mxu0 %v469
          %476 = vmatprep.subr.bf16.mxu0 0
          %477 = vmatpush1.bf16.msra.mxu0 0
          %478 = vmatprep.subr.bf16.mxu0 0
          %479 = vmatpush1.bf16.msra.mxu0 0
          %480 = vmatprep.subr.bf16.mxu0 0
          %481 = vmatpush1.bf16.msra.mxu0 0
          %482 = vmatprep.subr.bf16.mxu0 0
          %483 = vmatpush1.bf16.msra.mxu0 0
          %484 = vmatprep.subr.bf16.mxu0 0
          %485 = vmatpush1.bf16.msra.mxu0 0
          %486 = vmatprep.subr.bf16.mxu0 0
          %487 = vmatpush1.bf16.msra.mxu0 0
          %488 = vmatprep.subr.bf16.mxu0 0
          %489 = vmatpush1.bf16.msra.mxu0 0
          %490 = vmatprep.subr.bf16.mxu0 0
          %491 = vmatpush1.bf16.msra.mxu0 0
          %492 = vmatprep.subr.bf16.mxu0 0
          %493 = vmatpush1.bf16.msra.mxu0 0
          %494 = vmatprep.subr.bf16.mxu0 0
          %495 = vmatpush1.bf16.msra.mxu0 0
          %496 = vmatprep.subr.bf16.mxu0 0
          %497 = vmatpush1.bf16.msra.mxu0 0
          %498 = vmatprep.subr.bf16.mxu0 0
          %499 = vmatpush1.bf16.msra.mxu0 0
          %500 = vmatprep.subr.bf16.mxu0 0
          %501 = vmatpush1.bf16.msra.mxu0 0
          %502 = vmatprep.subr.bf16.mxu0 0
          %503 = vmatpush1.bf16.msra.mxu0 0
          %504 = vmatprep.mubr.bf16.mxu0 0
          %505 = vmatmul.mubr.bf16.gmra.mrb[0].mxu0 %v404
          %v506 = vpop.f32.mrb[0].mxu0
          %v507 = vadd.f32 %v458, %v506
          %v508 = vpop.f32.mrb[0].mxu0
          %v509 = vpop.f32.mrb[0].mxu0
          %v510 = vadd.f32 %v458, %v509
          %v511 = vpop.f32.mrb[0].mxu0
          %512 = vdwg.mxu0
          %v513 = vpack.c.bf16 %v444, %v441
          %vm514 = vcmask 64512
          %515 = vst.msk [vmem:[#allocation2] sm:$0xff] %vm514, %v513
          %v516 = vpack.c.bf16 %v510, %v507
          %517 = vst.msk [vmem:[#allocation3] sm:$0xff] %vm514, %v516
          %s518 = scalar_lea.vmem %s1, 80
          %v519 = vld [vmem:[%s518] sm:$0xf]
          %v520 = vld [vmem:[%s518 + $0x4] sm:$0xf]
          %v521 = vld [vmem:[%s518 + $0x8] sm:$0xf]
          %v522 = vld [vmem:[%s518 + $0xc] sm:$0xf]
          %s523 = scalar_lea.vmem %s5, 5
          %v524 = vld [vmem:[%s523] sm:$0x1]
          %v526 = vlaneseq
          %v527 = vshrl.u32 %v526, 7
          %v528 = vsub.s32 0, %v527
          %v529 = vrot.slane %v524, %v528
          %v535 = vunpack.c.l.b16 %v519
          %v536 = vunpack.c.l.b16 %v520
          %v537 = vunpack.c.l.b16 %v521
          %v538 = vunpack.c.l.b16 %v522
          %v539 = vpack.c.b16 %v536, %v535
          %v540 = vpack.c.b16 %v538, %v537
          %543 = vmatprep.subr.bf16.mxu0 0
          %544 = vmatpush1.bf16.msra.mxu0 %v539
          %545 = vmatprep.subr.bf16.mxu0 0
          %546 = vmatpush1.bf16.msra.mxu0 %v540
          %547 = vmatprep.subr.bf16.mxu0 0
          %548 = vmatpush1.bf16.msra.mxu0 0
          %549 = vmatprep.subr.bf16.mxu0 0
          %550 = vmatpush1.bf16.msra.mxu0 0
          %551 = vmatprep.subr.bf16.mxu0 0
          %552 = vmatpush1.bf16.msra.mxu0 0
          %553 = vmatprep.subr.bf16.mxu0 0
          %554 = vmatpush1.bf16.msra.mxu0 0
          %555 = vmatprep.subr.bf16.mxu0 0
          %556 = vmatpush1.bf16.msra.mxu0 0
          %557 = vmatprep.subr.bf16.mxu0 0
          %558 = vmatpush1.bf16.msra.mxu0 0
          %559 = vmatprep.subr.bf16.mxu0 0
          %560 = vmatpush1.bf16.msra.mxu0 0
          %561 = vmatprep.subr.bf16.mxu0 0
          %562 = vmatpush1.bf16.msra.mxu0 0
          %563 = vmatprep.subr.bf16.mxu0 0
          %564 = vmatpush1.bf16.msra.mxu0 0
          %565 = vmatprep.subr.bf16.mxu0 0
          %566 = vmatpush1.bf16.msra.mxu0 0
          %567 = vmatprep.subr.bf16.mxu0 0
          %568 = vmatpush1.bf16.msra.mxu0 0
          %569 = vmatprep.subr.bf16.mxu0 0
          %570 = vmatpush1.bf16.msra.mxu0 0
          %571 = vmatprep.subr.bf16.mxu0 0
          %572 = vmatpush1.bf16.msra.mxu0 0
          %573 = vmatprep.subr.bf16.mxu0 0
          %574 = vmatpush1.bf16.msra.mxu0 0
          %575 = vmatprep.mubr.bf16.mxu0 0
          %576 = vmatmul.mubr.bf16.gmra.mrb[0].mxu0 %v404
          %v577 = vpop.f32.mrb[0].mxu0
          %v578 = vadd.f32 %v529, %v577
          %v579 = vpop.f32.mrb[0].mxu0
          %v580 = vpop.f32.mrb[0].mxu0
          %v581 = vadd.f32 %v529, %v580
          %v582 = vpop.f32.mrb[0].mxu0
          %583 = vdwg.mxu0
          %s584 = scalar_lea.vmem %s1, 144
          %v585 = vld [vmem:[%s584] sm:$0xf]
          %v586 = vld [vmem:[%s584 + $0x4] sm:$0xf]
          %v587 = vld [vmem:[%s584 + $0x8] sm:$0xf]
          %v588 = vld [vmem:[%s584 + $0xc] sm:$0xf]
          %s589 = scalar_lea.vmem %s5, 9
          %v590 = vld [vmem:[%s589] sm:$0x1]
          %v592 = vlaneseq
          %v593 = vshrl.u32 %v592, 7
          %v594 = vsub.s32 0, %v593
          %v595 = vrot.slane %v590, %v594
          %v601 = vunpack.c.l.b16 %v585
          %v602 = vunpack.c.l.b16 %v586
          %v603 = vunpack.c.l.b16 %v587
          %v604 = vunpack.c.l.b16 %v588
          %v605 = vpack.c.b16 %v602, %v601
          %v606 = vpack.c.b16 %v604, %v603
          %609 = vmatprep.subr.bf16.mxu0 0
          %610 = vmatpush1.bf16.msra.mxu0 %v605
          %611 = vmatprep.subr.bf16.mxu0 0
          %612 = vmatpush1.bf16.msra.mxu0 %v606
          %613 = vmatprep.subr.bf16.mxu0 0
          %614 = vmatpush1.bf16.msra.mxu0 0
          %615 = vmatprep.subr.bf16.mxu0 0
          %616 = vmatpush1.bf16.msra.mxu0 0
          %617 = vmatprep.subr.bf16.mxu0 0
          %618 = vmatpush1.bf16.msra.mxu0 0
          %619 = vmatprep.subr.bf16.mxu0 0
          %620 = vmatpush1.bf16.msra.mxu0 0
          %621 = vmatprep.subr.bf16.mxu0 0
          %622 = vmatpush1.bf16.msra.mxu0 0
          %623 = vmatprep.subr.bf16.mxu0 0
          %624 = vmatpush1.bf16.msra.mxu0 0
          %625 = vmatprep.subr.bf16.mxu0 0
          %626 = vmatpush1.bf16.msra.mxu0 0
          %627 = vmatprep.subr.bf16.mxu0 0
          %628 = vmatpush1.bf16.msra.mxu0 0
          %629 = vmatprep.subr.bf16.mxu0 0
          %630 = vmatpush1.bf16.msra.mxu0 0
          %631 = vmatprep.subr.bf16.mxu0 0
          %632 = vmatpush1.bf16.msra.mxu0 0
          %633 = vmatprep.subr.bf16.mxu0 0
          %634 = vmatpush1.bf16.msra.mxu0 0
          %635 = vmatprep.subr.bf16.mxu0 0
          %636 = vmatpush1.bf16.msra.mxu0 0
          %637 = vmatprep.subr.bf16.mxu0 0
          %638 = vmatpush1.bf16.msra.mxu0 0
          %639 = vmatprep.subr.bf16.mxu0 0
          %640 = vmatpush1.bf16.msra.mxu0 0
          %641 = vmatprep.mubr.bf16.mxu0 0
          %642 = vmatmul.mubr.bf16.gmra.mrb[0].mxu0 %v404
          %v643 = vpop.f32.mrb[0].mxu0
          %v644 = vadd.f32 %v595, %v643
          %v645 = vpop.f32.mrb[0].mxu0
          %v646 = vpop.f32.mrb[0].mxu0
          %v647 = vadd.f32 %v595, %v646
          %v648 = vpop.f32.mrb[0].mxu0
          %649 = vdwg.mxu0
          %v650 = vpack.c.bf16 %v581, %v578
          %s651 = scalar_lea.vmem [#allocation2], 8
          %652 = vst.msk [vmem:[%s651] sm:$0xff] %vm514, %v650
          %v653 = vpack.c.bf16 %v647, %v644
          %s654 = scalar_lea.vmem [#allocation3], 8
          %655 = vst.msk [vmem:[%s654] sm:$0xff] %vm514, %v653
          %s656 = scalar_lea.vmem %s1, 96
          %v657 = vld [vmem:[%s656] sm:$0xf]
          %v658 = vld [vmem:[%s656 + $0x4] sm:$0xf]
          %v659 = vld [vmem:[%s656 + $0x8] sm:$0xf]
          %v660 = vld [vmem:[%s656 + $0xc] sm:$0xf]
          %s661 = scalar_lea.vmem %s5, 6
          %v662 = vld [vmem:[%s661] sm:$0x1]
          %v664 = vlaneseq
          %v665 = vshrl.u32 %v664, 7
          %v666 = vsub.s32 0, %v665
          %v667 = vrot.slane %v662, %v666
          %v673 = vunpack.c.l.b16 %v657
          %v674 = vunpack.c.l.b16 %v658
          %v675 = vunpack.c.l.b16 %v659
          %v676 = vunpack.c.l.b16 %v660
          %v677 = vpack.c.b16 %v674, %v673
          %v678 = vpack.c.b16 %v676, %v675
          %681 = vmatprep.subr.bf16.mxu0 0
          %682 = vmatpush1.bf16.msra.mxu0 %v677
          %683 = vmatprep.subr.bf16.mxu0 0
          %684 = vmatpush1.bf16.msra.mxu0 %v678
          %685 = vmatprep.subr.bf16.mxu0 0
          %686 = vmatpush1.bf16.msra.mxu0 0
          %687 = vmatprep.subr.bf16.mxu0 0
          %688 = vmatpush1.bf16.msra.mxu0 0
          %689 = vmatprep.subr.bf16.mxu0 0
          %690 = vmatpush1.bf16.msra.mxu0 0
          %691 = vmatprep.subr.bf16.mxu0 0
          %692 = vmatpush1.bf16.msra.mxu0 0
          %693 = vmatprep.subr.bf16.mxu0 0
          %694 = vmatpush1.bf16.msra.mxu0 0
          %695 = vmatprep.subr.bf16.mxu0 0
          %696 = vmatpush1.bf16.msra.mxu0 0
          %697 = vmatprep.subr.bf16.mxu0 0
          %698 = vmatpush1.bf16.msra.mxu0 0
          %699 = vmatprep.subr.bf16.mxu0 0
          %700 = vmatpush1.bf16.msra.mxu0 0
          %701 = vmatprep.subr.bf16.mxu0 0
          %702 = vmatpush1.bf16.msra.mxu0 0
          %703 = vmatprep.subr.bf16.mxu0 0
          %704 = vmatpush1.bf16.msra.mxu0 0
          %705 = vmatprep.subr.bf16.mxu0 0
          %706 = vmatpush1.bf16.msra.mxu0 0
          %707 = vmatprep.subr.bf16.mxu0 0
          %708 = vmatpush1.bf16.msra.mxu0 0
          %709 = vmatprep.subr.bf16.mxu0 0
          %710 = vmatpush1.bf16.msra.mxu0 0
          %711 = vmatprep.subr.bf16.mxu0 0
          %712 = vmatpush1.bf16.msra.mxu0 0
          %713 = vmatprep.mubr.bf16.mxu0 0
          %714 = vmatmul.mubr.bf16.gmra.mrb[0].mxu0 %v404
          %v715 = vpop.f32.mrb[0].mxu0
          %v716 = vadd.f32 %v667, %v715
          %v717 = vpop.f32.mrb[0].mxu0
          %v718 = vpop.f32.mrb[0].mxu0
          %v719 = vadd.f32 %v667, %v718
          %v720 = vpop.f32.mrb[0].mxu0
          %721 = vdwg.mxu0
          %s722 = scalar_lea.vmem %s1, 160
          %v723 = vld [vmem:[%s722] sm:$0xf]
          %v724 = vld [vmem:[%s722 + $0x4] sm:$0xf]
          %v725 = vld [vmem:[%s722 + $0x8] sm:$0xf]
          %v726 = vld [vmem:[%s722 + $0xc] sm:$0xf]
          %s727 = scalar_lea.vmem %s5, 10
          %v728 = vld [vmem:[%s727] sm:$0x1]
          %v730 = vlaneseq
          %v731 = vshrl.u32 %v730, 7
          %v732 = vsub.s32 0, %v731
          %v733 = vrot.slane %v728, %v732
          %v739 = vunpack.c.l.b16 %v723
          %v740 = vunpack.c.l.b16 %v724
          %v741 = vunpack.c.l.b16 %v725
          %v742 = vunpack.c.l.b16 %v726
          %v743 = vpack.c.b16 %v740, %v739
          %v744 = vpack.c.b16 %v742, %v741
          %747 = vmatprep.subr.bf16.mxu0 0
          %748 = vmatpush1.bf16.msra.mxu0 %v743
          %749 = vmatprep.subr.bf16.mxu0 0
          %750 = vmatpush1.bf16.msra.mxu0 %v744
          %751 = vmatprep.subr.bf16.mxu0 0
          %752 = vmatpush1.bf16.msra.mxu0 0
          %753 = vmatprep.subr.bf16.mxu0 0
          %754 = vmatpush1.bf16.msra.mxu0 0
          %755 = vmatprep.subr.bf16.mxu0 0
          %756 = vmatpush1.bf16.msra.mxu0 0
          %757 = vmatprep.subr.bf16.mxu0 0
          %758 = vmatpush1.bf16.msra.mxu0 0
          %759 = vmatprep.subr.bf16.mxu0 0
          %760 = vmatpush1.bf16.msra.mxu0 0
          %761 = vmatprep.subr.bf16.mxu0 0
          %762 = vmatpush1.bf16.msra.mxu0 0
          %763 = vmatprep.subr.bf16.mxu0 0
          %764 = vmatpush1.bf16.msra.mxu0 0
          %765 = vmatprep.subr.bf16.mxu0 0
          %766 = vmatpush1.bf16.msra.mxu0 0
          %767 = vmatprep.subr.bf16.mxu0 0
          %768 = vmatpush1.bf16.msra.mxu0 0
          %769 = vmatprep.subr.bf16.mxu0 0
          %770 = vmatpush1.bf16.msra.mxu0 0
          %771 = vmatprep.subr.bf16.mxu0 0
          %772 = vmatpush1.bf16.msra.mxu0 0
          %773 = vmatprep.subr.bf16.mxu0 0
          %774 = vmatpush1.bf16.msra.mxu0 0
          %775 = vmatprep.subr.bf16.mxu0 0
          %776 = vmatpush1.bf16.msra.mxu0 0
          %777 = vmatprep.subr.bf16.mxu0 0
          %778 = vmatpush1.bf16.msra.mxu0 0
          %779 = vmatprep.mubr.bf16.mxu0 0
          %780 = vmatmul.mubr.bf16.gmra.mrb[0].mxu0 %v404
          %v781 = vpop.f32.mrb[0].mxu0
          %v782 = vadd.f32 %v733, %v781
          %v783 = vpop.f32.mrb[0].mxu0
          %v784 = vpop.f32.mrb[0].mxu0
          %v785 = vadd.f32 %v733, %v784
          %v786 = vpop.f32.mrb[0].mxu0
          %787 = vdwg.mxu0
          %v788 = vpack.c.bf16 %v719, %v716
          %s789 = scalar_lea.vmem [#allocation2], 16
          %790 = vst.msk [vmem:[%s789] sm:$0xff] %vm514, %v788
          %v791 = vpack.c.bf16 %v785, %v782
          %s792 = scalar_lea.vmem [#allocation3], 16
          %793 = vst.msk [vmem:[%s792] sm:$0xff] %vm514, %v791
          %s794 = scalar_lea.vmem %s1, 112
          %v795 = vld [vmem:[%s794] sm:$0xf]
          %v796 = vld [vmem:[%s794 + $0x4] sm:$0xf]
          %v797 = vld [vmem:[%s794 + $0x8] sm:$0xf]
          %v798 = vld [vmem:[%s794 + $0xc] sm:$0xf]
          %s799 = scalar_lea.vmem %s5, 7
          %v800 = vld [vmem:[%s799] sm:$0x1]
          %v802 = vlaneseq
          %v803 = vshrl.u32 %v802, 7
          %v804 = vsub.s32 0, %v803
          %v805 = vrot.slane %v800, %v804
          %v811 = vunpack.c.l.b16 %v795
          %v812 = vunpack.c.l.b16 %v796
          %v813 = vunpack.c.l.b16 %v797
          %v814 = vunpack.c.l.b16 %v798
          %v815 = vpack.c.b16 %v812, %v811
          %v816 = vpack.c.b16 %v814, %v813
          %819 = vmatprep.subr.bf16.mxu0 0
          %820 = vmatpush1.bf16.msra.mxu0 %v815
          %821 = vmatprep.subr.bf16.mxu0 0
          %822 = vmatpush1.bf16.msra.mxu0 %v816
          %823 = vmatprep.subr.bf16.mxu0 0
          %824 = vmatpush1.bf16.msra.mxu0 0
          %825 = vmatprep.subr.bf16.mxu0 0
          %826 = vmatpush1.bf16.msra.mxu0 0
          %827 = vmatprep.subr.bf16.mxu0 0
          %828 = vmatpush1.bf16.msra.mxu0 0
          %829 = vmatprep.subr.bf16.mxu0 0
          %830 = vmatpush1.bf16.msra.mxu0 0
          %831 = vmatprep.subr.bf16.mxu0 0
          %832 = vmatpush1.bf16.msra.mxu0 0
          %833 = vmatprep.subr.bf16.mxu0 0
          %834 = vmatpush1.bf16.msra.mxu0 0
          %835 = vmatprep.subr.bf16.mxu0 0
          %836 = vmatpush1.bf16.msra.mxu0 0
          %837 = vmatprep.subr.bf16.mxu0 0
          %838 = vmatpush1.bf16.msra.mxu0 0
          %839 = vmatprep.subr.bf16.mxu0 0
          %840 = vmatpush1.bf16.msra.mxu0 0
          %841 = vmatprep.subr.bf16.mxu0 0
          %842 = vmatpush1.bf16.msra.mxu0 0
          %843 = vmatprep.subr.bf16.mxu0 0
          %844 = vmatpush1.bf16.msra.mxu0 0
          %845 = vmatprep.subr.bf16.mxu0 0
          %846 = vmatpush1.bf16.msra.mxu0 0
          %847 = vmatprep.subr.bf16.mxu0 0
          %848 = vmatpush1.bf16.msra.mxu0 0
          %849 = vmatprep.subr.bf16.mxu0 0
          %850 = vmatpush1.bf16.msra.mxu0 0
          %851 = vmatprep.mubr.bf16.mxu0 0
          %852 = vmatmul.mubr.bf16.gmra.mrb[0].mxu0 %v404
          %v853 = vpop.f32.mrb[0].mxu0
          %v854 = vadd.f32 %v805, %v853
          %v855 = vpop.f32.mrb[0].mxu0
          %v856 = vpop.f32.mrb[0].mxu0
          %v857 = vadd.f32 %v805, %v856
          %v858 = vpop.f32.mrb[0].mxu0
          %859 = vdwg.mxu0
          %s860 = scalar_lea.vmem %s1, 176
          %v861 = vld [vmem:[%s860] sm:$0xf]
          %v862 = vld [vmem:[%s860 + $0x4] sm:$0xf]
          %v863 = vld [vmem:[%s860 + $0x8] sm:$0xf]
          %v864 = vld [vmem:[%s860 + $0xc] sm:$0xf]
          %s865 = scalar_lea.vmem %s5, 11
          %v866 = vld [vmem:[%s865] sm:$0x1]
          %v868 = vlaneseq
          %v869 = vshrl.u32 %v868, 7
          %v870 = vsub.s32 0, %v869
          %v871 = vrot.slane %v866, %v870
          %v877 = vunpack.c.l.b16 %v861
          %v878 = vunpack.c.l.b16 %v862
          %v879 = vunpack.c.l.b16 %v863
          %v880 = vunpack.c.l.b16 %v864
          %v881 = vpack.c.b16 %v878, %v877
          %v882 = vpack.c.b16 %v880, %v879
          %885 = vmatprep.subr.bf16.mxu0 0
          %886 = vmatpush1.bf16.msra.mxu0 %v881
          %887 = vmatprep.subr.bf16.mxu0 0
          %888 = vmatpush1.bf16.msra.mxu0 %v882
          %889 = vmatprep.subr.bf16.mxu0 0
          %890 = vmatpush1.bf16.msra.mxu0 0
          %891 = vmatprep.subr.bf16.mxu0 0
          %892 = vmatpush1.bf16.msra.mxu0 0
          %893 = vmatprep.subr.bf16.mxu0 0
          %894 = vmatpush1.bf16.msra.mxu0 0
          %895 = vmatprep.subr.bf16.mxu0 0
          %896 = vmatpush1.bf16.msra.mxu0 0
          %897 = vmatprep.subr.bf16.mxu0 0
          %898 = vmatpush1.bf16.msra.mxu0 0
          %899 = vmatprep.subr.bf16.mxu0 0
          %900 = vmatpush1.bf16.msra.mxu0 0
          %901 = vmatprep.subr.bf16.mxu0 0
          %902 = vmatpush1.bf16.msra.mxu0 0
          %903 = vmatprep.subr.bf16.mxu0 0
          %904 = vmatpush1.bf16.msra.mxu0 0
          %905 = vmatprep.subr.bf16.mxu0 0
          %906 = vmatpush1.bf16.msra.mxu0 0
          %907 = vmatprep.subr.bf16.mxu0 0
          %908 = vmatpush1.bf16.msra.mxu0 0
          %909 = vmatprep.subr.bf16.mxu0 0
          %910 = vmatpush1.bf16.msra.mxu0 0
          %911 = vmatprep.subr.bf16.mxu0 0
          %912 = vmatpush1.bf16.msra.mxu0 0
          %913 = vmatprep.subr.bf16.mxu0 0
          %914 = vmatpush1.bf16.msra.mxu0 0
          %915 = vmatprep.subr.bf16.mxu0 0
          %916 = vmatpush1.bf16.msra.mxu0 0
          %917 = vmatprep.mubr.bf16.mxu0 0
          %918 = vmatmul.mubr.bf16.gmra.mrb[0].mxu0 %v404
          %v919 = vpop.f32.mrb[0].mxu0
          %v920 = vadd.f32 %v871, %v919
          %v921 = vpop.f32.mrb[0].mxu0
          %v922 = vpop.f32.mrb[0].mxu0
          %v923 = vadd.f32 %v871, %v922
          %v924 = vpop.f32.mrb[0].mxu0
          %925 = vdwg.mxu0
          %v926 = vpack.c.bf16 %v857, %v854
          %s927 = scalar_lea.vmem [#allocation2], 24
          %928 = vst.msk [vmem:[%s927] sm:$0xff] %vm514, %v926
          %v929 = vpack.c.bf16 %v923, %v920
          %s930 = scalar_lea.vmem [#allocation3], 24
          %931 = vst.msk [vmem:[%s930] sm:$0xff] %vm514, %v929
        $region56: #{tpu_custom_call.1} parent=51 // pred_fallthru
          _
        %s932 = smul.u32 %s27, 8
        %s933 = scalar_lea.vmem %s317, %s932
        %v934 = vld [vmem:[%s933] sm:$0xff]
        %vm935 = vcmask 261120
        %v936 = vsel %vm935, %v934, 0.0
        %937 = vadd.xlane.f32.xlu0 %v936
        %v938 = vpop.xlane.xlu0 %937
        %v939 = vrcp.pop 32.0
        %v940 = vmul.f32 %v938, %v939
        %v941 = vmul.f32 %v934, %v934
        %v942 = vsel %vm935, %v941, 0.0
        %943 = vadd.xlane.f32.xlu0 %v942
        %v944 = vpop.xlane.xlu0 %943
        %v945 = vmul.f32 %v944, %v939
        %v946 = vmul.f32 %v940, %v940
        %v947 = vsub.f32 %v945, %v946
        %v948 = vmax.f32 %v947, 0.0
        %v949 = vsub.f32 %v934, %v940
        %v950 = vadd.f32 %v948, 1e-06
        %v951 = vrsqrt.pop %v950
        %v952 = vmul.f32 %v949, %v951
        %v953 = vlaneseq
        %v954 = vshrl.u32 %v953, 7
        %v955 = vsub.s32 0, %v954
        %v956 = vrot.slane %v319, %v955
        %v957 = vmul.f32 %v952, %v956
        %v958 = vlaneseq
        %v959 = vshrl.u32 %v958, 7
        %v960 = vsub.s32 0, %v959
        %v961 = vrot.slane %v320, %v960
        %v962 = vadd.f32 %v957, %v961
        %v963 = vpack.c.bf16 %v962, %v962
        %v964 = vld [vmem:[%s1] sm:$0xf]
        %v965 = vld [vmem:[%s1 + $0x4] sm:$0xf]
        %v966 = vld [vmem:[%s1 + $0x8] sm:$0xf]
        %v967 = vld [vmem:[%s1 + $0xc] sm:$0xf]
        %v968 = vld [vmem:[%s5] sm:$0x1]
        %v970 = vlaneseq
        %v971 = vshrl.u32 %v970, 7
        %v972 = vsub.s32 0, %v971
        %v973 = vrot.slane %v968, %v972
        %v979 = vunpack.c.l.b16 %v964
        %v980 = vunpack.c.l.b16 %v965
        %v981 = vunpack.c.l.b16 %v966
        %v982 = vunpack.c.l.b16 %v967
        %v983 = vpack.c.b16 %v980, %v979
        %v984 = vpack.c.b16 %v982, %v981
        %v988 = vsel %vm935, %v963, 0
        %990 = vmatprep.subr.bf16.mxu0 0
        %991 = vmatpush1.bf16.msra.mxu0 %v983
        %992 = vmatprep.subr.bf16.mxu0 0
        %993 = vmatpush1.bf16.msra.mxu0 %v984
        %994 = vmatprep.subr.bf16.mxu0 0
        %995 = vmatpush1.bf16.msra.mxu0 0
        %996 = vmatprep.subr.bf16.mxu0 0
        %997 = vmatpush1.bf16.msra.mxu0 0
        %998 = vmatprep.subr.bf16.mxu0 0
        %999 = vmatpush1.bf16.msra.mxu0 0
        %1000 = vmatprep.subr.bf16.mxu0 0
        %1001 = vmatpush1.bf16.msra.mxu0 0
        %1002 = vmatprep.subr.bf16.mxu0 0
        %1003 = vmatpush1.bf16.msra.mxu0 0
        %1004 = vmatprep.subr.bf16.mxu0 0
        %1005 = vmatpush1.bf16.msra.mxu0 0
        %1006 = vmatprep.subr.bf16.mxu0 0
        %1007 = vmatpush1.bf16.msra.mxu0 0
        %1008 = vmatprep.subr.bf16.mxu0 0
        %1009 = vmatpush1.bf16.msra.mxu0 0
        %1010 = vmatprep.subr.bf16.mxu0 0
        %1011 = vmatpush1.bf16.msra.mxu0 0
        %1012 = vmatprep.subr.bf16.mxu0 0
        %1013 = vmatpush1.bf16.msra.mxu0 0
        %1014 = vmatprep.subr.bf16.mxu0 0
        %1015 = vmatpush1.bf16.msra.mxu0 0
        %1016 = vmatprep.subr.bf16.mxu0 0
        %1017 = vmatpush1.bf16.msra.mxu0 0
        %1018 = vmatprep.subr.bf16.mxu0 0
        %1019 = vmatpush1.bf16.msra.mxu0 0
        %1020 = vmatprep.subr.bf16.mxu0 0
        %1021 = vmatpush1.bf16.msra.mxu0 0
        %1022 = vmatprep.mubr.bf16.mxu0 0
        %1023 = vmatmul.mubr.bf16.gmra.mrb[0].mxu0 %v988
        %v1024 = vpop.f32.mrb[0].mxu0
        %v1025 = vadd.f32 %v973, %v1024
        %v1026 = vpop.f32.mrb[0].mxu0
        %v1027 = vpop.f32.mrb[0].mxu0
        %v1028 = vpop.f32.mrb[0].mxu0
        %1029 = vdwg.mxu0
        %v1030 = vpack.c.bf16 %v1025, %v1025
        %v1031 = vld [vmem:[#allocation2] sm:$0xff]
        %vm1032 = vcmask 64512
        %v1034 = vsel %vm1032, %v1030, 0
        %v1037 = vsel %vm1032, %v1031, 0
        %1039 = vmatprep.subr.bf16.mxu0 0
        %1040 = vmatpush1.bf16.xpose.msra.mxu0 %v1037
        %1041 = vmatprep.subr.bf16.mxu0 0
        %1042 = vmatpush1.bf16.xpose.msra.mxu0 0
        %1043 = vmatprep.subr.bf16.mxu0 0
        %1044 = vmatpush1.bf16.xpose.msra.mxu0 0
        %1045 = vmatprep.subr.bf16.mxu0 0
        %1046 = vmatpush1.bf16.xpose.msra.mxu0 0
        %1047 = vmatprep.subr.bf16.mxu0 0
        %1048 = vmatpush1.bf16.xpose.msra.mxu0 0
        %1049 = vmatprep.subr.bf16.mxu0 0
        %1050 = vmatpush1.bf16.xpose.msra.mxu0 0
        %1051 = vmatprep.subr.bf16.mxu0 0
        %1052 = vmatpush1.bf16.xpose.msra.mxu0 0
        %1053 = vmatprep.subr.bf16.mxu0 0
        %1054 = vmatpush1.bf16.xpose.msra.mxu0 0
        %1055 = vmatprep.subr.bf16.mxu0 0
        %1056 = vmatpush1.bf16.xpose.msra.mxu0 0
        %1057 = vmatprep.subr.bf16.mxu0 0
        %1058 = vmatpush1.bf16.xpose.msra.mxu0 0
        %1059 = vmatprep.subr.bf16.mxu0 0
        %1060 = vmatpush1.bf16.xpose.msra.mxu0 0
        %1061 = vmatprep.subr.bf16.mxu0 0
        %1062 = vmatpush1.bf16.xpose.msra.mxu0 0
        %1063 = vmatprep.subr.bf16.mxu0 0
        %1064 = vmatpush1.bf16.xpose.msra.mxu0 0
        %1065 = vmatprep.subr.bf16.mxu0 0
        %1066 = vmatpush1.bf16.xpose.msra.mxu0 0
        %1067 = vmatprep.subr.bf16.mxu0 0
        %1068 = vmatpush1.bf16.xpose.msra.mxu0 0
        %1069 = vmatprep.subr.bf16.mxu0 0
        %1070 = vmatpush1.bf16.xpose.msra.mxu0 0
        %1071 = vmatprep.mubr.bf16.mxu0 0
        %1072 = vmatmul.mubr.bf16.gmra.mrb[0].mxu0 %v1034
        %v1073 = vpop.f32.mrb[0].mxu0
        %v1074 = vadd.f32 0.0, %v1073
        %v1075 = vpop.f32.mrb[0].mxu0
        %v1076 = vpop.f32.mrb[0].mxu0
        %v1077 = vpop.f32.mrb[0].mxu0
        %1078 = vdwg.mxu0
        %vm1079 = vcmask 130048
        %v1080 = vsel %vm1079, %v1074, -inf
        %1081 = vmax.xlane.f32.xlu0 %v1080
        %v1082 = vpop.xlane.xlu0 %1081
        %v1083 = vsub.f32 %v1074, %v1082
        %v1084 = vmul.f32 %v1083, 1.442695
        %v1085 = vpow.pop %v1084
        %v1086 = vsel %vm1079, %v1085, 0.0
        %1087 = vadd.xlane.f32.xlu0 %v1086
        %v1088 = vpop.xlane.xlu0 %1087
        %v1089 = vrcp.pop %v1088
        %v1090 = vmul.f32 %v1085, %v1089
        %v1091 = vpack.c.bf16 %v1090, %v1090
        %v1092 = vld [vmem:[#allocation3] sm:$0xff]
        %v1094 = vsel %vm1079, %v1091, 0
        %1096 = vmatprep.subr.bf16.mxu0 0
        %1097 = vmatpush1.bf16.msra.mxu0 %v1092
        %1098 = vmatprep.subr.bf16.mxu0 0
        %1099 = vmatpush1.bf16.msra.mxu0 0
        %1100 = vmatprep.subr.bf16.mxu0 0
        %1101 = vmatpush1.bf16.msra.mxu0 0
        %1102 = vmatprep.subr.bf16.mxu0 0
        %1103 = vmatpush1.bf16.msra.mxu0 0
        %1104 = vmatprep.subr.bf16.mxu0 0
        %1105 = vmatpush1.bf16.msra.mxu0 0
        %1106 = vmatprep.subr.bf16.mxu0 0
        %1107 = vmatpush1.bf16.msra.mxu0 0
        %1108 = vmatprep.subr.bf16.mxu0 0
        %1109 = vmatpush1.bf16.msra.mxu0 0
        %1110 = vmatprep.subr.bf16.mxu0 0
        %1111 = vmatpush1.bf16.msra.mxu0 0
        %1112 = vmatprep.subr.bf16.mxu0 0
        %1113 = vmatpush1.bf16.msra.mxu0 0
        %1114 = vmatprep.subr.bf16.mxu0 0
        %1115 = vmatpush1.bf16.msra.mxu0 0
        %1116 = vmatprep.subr.bf16.mxu0 0
        %1117 = vmatpush1.bf16.msra.mxu0 0
        %1118 = vmatprep.subr.bf16.mxu0 0
        %1119 = vmatpush1.bf16.msra.mxu0 0
        %1120 = vmatprep.subr.bf16.mxu0 0
        %1121 = vmatpush1.bf16.msra.mxu0 0
        %1122 = vmatprep.subr.bf16.mxu0 0
        %1123 = vmatpush1.bf16.msra.mxu0 0
        %1124 = vmatprep.subr.bf16.mxu0 0
        %1125 = vmatpush1.bf16.msra.mxu0 0
        %1126 = vmatprep.subr.bf16.mxu0 0
        %1127 = vmatpush1.bf16.msra.mxu0 0
        %1128 = vmatprep.mubr.bf16.mxu0 0
        %1129 = vmatmul.mubr.bf16.gmra.mrb[0].mxu0 %v1094
        %v1130 = vpop.f32.mrb[0].mxu0
        %v1131 = vadd.f32 0.0, %v1130
        %v1132 = vpop.f32.mrb[0].mxu0
        %v1133 = vpop.f32.mrb[0].mxu0
        %v1134 = vpop.f32.mrb[0].mxu0
        %1135 = vdwg.mxu0
        %v1136 = vpack.c.bf16 %v1131, %v1131
        %v1137 = vld [vmem:[%s2] sm:$0xf]
        %s1138 = scalar_lea.vmem %s1, 16
        %v1139 = vld [vmem:[%s1138] sm:$0xf]
        %v1140 = vld [vmem:[%s1138 + $0x4] sm:$0xf]
        %v1141 = vld [vmem:[%s1138 + $0x8] sm:$0xf]
        %v1142 = vld [vmem:[%s1138 + $0xc] sm:$0xf]
        %s1143 = scalar_lea.vmem %s5, 1
        %v1144 = vld [vmem:[%s1143] sm:$0x1]
        %v1146 = vlaneseq
        %v1147 = vshrl.u32 %v1146, 7
        %v1148 = vsub.s32 0, %v1147
        %v1149 = vrot.slane %v1144, %v1148
        %v1155 = vunpack.c.l.b16 %v1139
        %v1156 = vunpack.c.l.b16 %v1140
        %v1157 = vunpack.c.l.b16 %v1141
        %v1158 = vunpack.c.l.b16 %v1142
        %v1159 = vpack.c.b16 %v1156, %v1155
        %v1160 = vpack.c.b16 %v1158, %v1157
        %1163 = vmatprep.subr.bf16.mxu0 0
        %1164 = vmatpush1.bf16.msra.mxu0 %v1159
        %1165 = vmatprep.subr.bf16.mxu0 0
        %1166 = vmatpush1.bf16.msra.mxu0 %v1160
        %1167 = vmatprep.subr.bf16.mxu0 0
        %1168 = vmatpush1.bf16.msra.mxu0 0
        %1169 = vmatprep.subr.bf16.mxu0 0
        %1170 = vmatpush1.bf16.msra.mxu0 0
        %1171 = vmatprep.subr.bf16.mxu0 0
        %1172 = vmatpush1.bf16.msra.mxu0 0
        %1173 = vmatprep.subr.bf16.mxu0 0
        %1174 = vmatpush1.bf16.msra.mxu0 0
        %1175 = vmatprep.subr.bf16.mxu0 0
        %1176 = vmatpush1.bf16.msra.mxu0 0
        %1177 = vmatprep.subr.bf16.mxu0 0
        %1178 = vmatpush1.bf16.msra.mxu0 0
        %1179 = vmatprep.subr.bf16.mxu0 0
        %1180 = vmatpush1.bf16.msra.mxu0 0
        %1181 = vmatprep.subr.bf16.mxu0 0
        %1182 = vmatpush1.bf16.msra.mxu0 0
        %1183 = vmatprep.subr.bf16.mxu0 0
        %1184 = vmatpush1.bf16.msra.mxu0 0
        %1185 = vmatprep.subr.bf16.mxu0 0
        %1186 = vmatpush1.bf16.msra.mxu0 0
        %1187 = vmatprep.subr.bf16.mxu0 0
        %1188 = vmatpush1.bf16.msra.mxu0 0
        %1189 = vmatprep.subr.bf16.mxu0 0
        %1190 = vmatpush1.bf16.msra.mxu0 0
        %1191 = vmatprep.subr.bf16.mxu0 0
        %1192 = vmatpush1.bf16.msra.mxu0 0
        %1193 = vmatprep.subr.bf16.mxu0 0
        %1194 = vmatpush1.bf16.msra.mxu0 0
        %1195 = vmatprep.mubr.bf16.mxu0 0
        %1196 = vmatmul.mubr.bf16.gmra.mrb[0].mxu0 %v988
        %v1197 = vpop.f32.mrb[0].mxu0
        %v1198 = vadd.f32 %v1149, %v1197
        %v1199 = vpop.f32.mrb[0].mxu0
        %v1200 = vpop.f32.mrb[0].mxu0
        %v1201 = vpop.f32.mrb[0].mxu0
        %1202 = vdwg.mxu0
        %v1203 = vpack.c.bf16 %v1198, %v1198
        %s1204 = scalar_lea.vmem [#allocation2], 8
        %v1205 = vld [vmem:[%s1204] sm:$0xff]
        %v1207 = vsel %vm1032, %v1203, 0
        %v1210 = vsel %vm1032, %v1205, 0
        %1212 = vmatprep.subr.bf16.mxu0 0
        %1213 = vmatpush1.bf16.xpose.msra.mxu0 %v1210
        %1214 = vmatprep.subr.bf16.mxu0 0
        %1215 = vmatpush1.bf16.xpose.msra.mxu0 0
        %1216 = vmatprep.subr.bf16.mxu0 0
        %1217 = vmatpush1.bf16.xpose.msra.mxu0 0
        %1218 = vmatprep.subr.bf16.mxu0 0
        %1219 = vmatpush1.bf16.xpose.msra.mxu0 0
        %1220 = vmatprep.subr.bf16.mxu0 0
        %1221 = vmatpush1.bf16.xpose.msra.mxu0 0
        %1222 = vmatprep.subr.bf16.mxu0 0
        %1223 = vmatpush1.bf16.xpose.msra.mxu0 0
        %1224 = vmatprep.subr.bf16.mxu0 0
        %1225 = vmatpush1.bf16.xpose.msra.mxu0 0
        %1226 = vmatprep.subr.bf16.mxu0 0
        %1227 = vmatpush1.bf16.xpose.msra.mxu0 0
        %1228 = vmatprep.subr.bf16.mxu0 0
        %1229 = vmatpush1.bf16.xpose.msra.mxu0 0
        %1230 = vmatprep.subr.bf16.mxu0 0
        %1231 = vmatpush1.bf16.xpose.msra.mxu0 0
        %1232 = vmatprep.subr.bf16.mxu0 0
        %1233 = vmatpush1.bf16.xpose.msra.mxu0 0
        %1234 = vmatprep.subr.bf16.mxu0 0
        %1235 = vmatpush1.bf16.xpose.msra.mxu0 0
        %1236 = vmatprep.subr.bf16.mxu0 0
        %1237 = vmatpush1.bf16.xpose.msra.mxu0 0
        %1238 = vmatprep.subr.bf16.mxu0 0
        %1239 = vmatpush1.bf16.xpose.msra.mxu0 0
        %1240 = vmatprep.subr.bf16.mxu0 0
        %1241 = vmatpush1.bf16.xpose.msra.mxu0 0
        %1242 = vmatprep.subr.bf16.mxu0 0
        %1243 = vmatpush1.bf16.xpose.msra.mxu0 0
        %1244 = vmatprep.mubr.bf16.mxu0 0
        %1245 = vmatmul.mubr.bf16.gmra.mrb[0].mxu0 %v1207
        %v1246 = vpop.f32.mrb[0].mxu0
        %v1247 = vadd.f32 0.0, %v1246
        %v1248 = vpop.f32.mrb[0].mxu0
        %v1249 = vpop.f32.mrb[0].mxu0
        %v1250 = vpop.f32.mrb[0].mxu0
        %1251 = vdwg.mxu0
        %v1252 = vsel %vm1079, %v1247, -inf
        %1253 = vmax.xlane.f32.xlu0 %v1252
        %v1254 = vpop.xlane.xlu0 %1253
        %v1255 = vsub.f32 %v1247, %v1254
        %v1256 = vmul.f32 %v1255, 1.442695
        %v1257 = vpow.pop %v1256
        %v1258 = vsel %vm1079, %v1257, 0.0
        %1259 = vadd.xlane.f32.xlu0 %v1258
        %v1260 = vpop.xlane.xlu0 %1259
        %v1261 = vrcp.pop %v1260
        %v1262 = vmul.f32 %v1257, %v1261
        %v1263 = vpack.c.bf16 %v1262, %v1262
        %s1264 = scalar_lea.vmem [#allocation3], 8
        %v1265 = vld [vmem:[%s1264] sm:$0xff]
        %v1267 = vsel %vm1079, %v1263, 0
        %1269 = vmatprep.subr.bf16.mxu0 0
        %1270 = vmatpush1.bf16.msra.mxu0 %v1265
        %1271 = vmatprep.subr.bf16.mxu0 0
        %1272 = vmatpush1.bf16.msra.mxu0 0
        %1273 = vmatprep.subr.bf16.mxu0 0
        %1274 = vmatpush1.bf16.msra.mxu0 0
        %1275 = vmatprep.subr.bf16.mxu0 0
        %1276 = vmatpush1.bf16.msra.mxu0 0
        %1277 = vmatprep.subr.bf16.mxu0 0
        %1278 = vmatpush1.bf16.msra.mxu0 0
        %1279 = vmatprep.subr.bf16.mxu0 0
        %1280 = vmatpush1.bf16.msra.mxu0 0
        %1281 = vmatprep.subr.bf16.mxu0 0
        %1282 = vmatpush1.bf16.msra.mxu0 0
        %1283 = vmatprep.subr.bf16.mxu0 0
        %1284 = vmatpush1.bf16.msra.mxu0 0
        %1285 = vmatprep.subr.bf16.mxu0 0
        %1286 = vmatpush1.bf16.msra.mxu0 0
        %1287 = vmatprep.subr.bf16.mxu0 0
        %1288 = vmatpush1.bf16.msra.mxu0 0
        %1289 = vmatprep.subr.bf16.mxu0 0
        %1290 = vmatpush1.bf16.msra.mxu0 0
        %1291 = vmatprep.subr.bf16.mxu0 0
        %1292 = vmatpush1.bf16.msra.mxu0 0
        %1293 = vmatprep.subr.bf16.mxu0 0
        %1294 = vmatpush1.bf16.msra.mxu0 0
        %1295 = vmatprep.subr.bf16.mxu0 0
        %1296 = vmatpush1.bf16.msra.mxu0 0
        %1297 = vmatprep.subr.bf16.mxu0 0
        %1298 = vmatpush1.bf16.msra.mxu0 0
        %1299 = vmatprep.subr.bf16.mxu0 0
        %1300 = vmatpush1.bf16.msra.mxu0 0
        %1301 = vmatprep.mubr.bf16.mxu0 0
        %1302 = vmatmul.mubr.bf16.gmra.mrb[0].mxu0 %v1267
        %v1303 = vpop.f32.mrb[0].mxu0
        %v1304 = vadd.f32 0.0, %v1303
        %v1305 = vpop.f32.mrb[0].mxu0
        %v1306 = vpop.f32.mrb[0].mxu0
        %v1307 = vpop.f32.mrb[0].mxu0
        %1308 = vdwg.mxu0
        %v1309 = vpack.c.bf16 %v1304, %v1304
        %s1310 = scalar_lea.vmem %s2, 4
        %v1311 = vld [vmem:[%s1310] sm:$0xf]
        %v1313 = vsel %vm1032, %v1309, 0
        %vm1315 = vcmask 1043456
        %v1317 = vsel %vm1315, %v1311, 0
        %1319 = vmatprep.subr.bf16.mxu0 0
        %1320 = vmatpush1.bf16.msra.mxu0 %v1317
        %1321 = vmatprep.subr.bf16.mxu0 0
        %1322 = vmatpush1.bf16.msra.mxu0 0
        %1323 = vmatprep.subr.bf16.mxu0 0
        %1324 = vmatpush1.bf16.msra.mxu0 0
        %1325 = vmatprep.subr.bf16.mxu0 0
        %1326 = vmatpush1.bf16.msra.mxu0 0
        %1327 = vmatprep.subr.bf16.mxu0 0
        %1328 = vmatpush1.bf16.msra.mxu0 0
        %1329 = vmatprep.subr.bf16.mxu0 0
        %1330 = vmatpush1.bf16.msra.mxu0 0
        %1331 = vmatprep.subr.bf16.mxu0 0
        %1332 = vmatpush1.bf16.msra.mxu0 0
        %1333 = vmatprep.subr.bf16.mxu0 0
        %1334 = vmatpush1.bf16.msra.mxu0 0
        %1335 = vmatprep.subr.bf16.mxu0 0
        %1336 = vmatpush1.bf16.msra.mxu0 0
        %1337 = vmatprep.subr.bf16.mxu0 0
        %1338 = vmatpush1.bf16.msra.mxu0 0
        %1339 = vmatprep.subr.bf16.mxu0 0
        %1340 = vmatpush1.bf16.msra.mxu0 0
        %1341 = vmatprep.subr.bf16.mxu0 0
        %1342 = vmatpush1.bf16.msra.mxu0 0
        %1343 = vmatprep.subr.bf16.mxu0 0
        %1344 = vmatpush1.bf16.msra.mxu0 0
        %1345 = vmatprep.subr.bf16.mxu0 0
        %1346 = vmatpush1.bf16.msra.mxu0 0
        %1347 = vmatprep.subr.bf16.mxu0 0
        %1348 = vmatpush1.bf16.msra.mxu0 0
        %1349 = vmatprep.subr.bf16.mxu0 0
        %1350 = vmatpush1.bf16.msra.mxu0 0
        %1351 = vmatprep.mubr.bf16.mxu0 0
        %1352 = vmatmul.mubr.bf16.gmra.mrb[0].mxu0 %v1313
        %v1353 = vpop.f32.mrb[0].mxu0
        %v1354 = vadd.f32 0.0, %v1353
        %v1355 = vpop.f32.mrb[0].mxu0
        %v1356 = vpop.f32.mrb[0].mxu0
        %v1357 = vpop.f32.mrb[0].mxu0
        %1358 = vdwg.mxu0
        %v1360 = vsel %vm1032, %v1136, 0
        %v1363 = vsel %vm1315, %v1137, 0
        %1365 = vmatprep.subr.bf16.mxu0 0
        %1366 = vmatpush1.bf16.msra.mxu0 %v1363
        %1367 = vmatprep.subr.bf16.mxu0 0
        %1368 = vmatpush1.bf16.msra.mxu0 0
        %1369 = vmatprep.subr.bf16.mxu0 0
        %1370 = vmatpush1.bf16.msra.mxu0 0
        %1371 = vmatprep.subr.bf16.mxu0 0
        %1372 = vmatpush1.bf16.msra.mxu0 0
        %1373 = vmatprep.subr.bf16.mxu0 0
        %1374 = vmatpush1.bf16.msra.mxu0 0
        %1375 = vmatprep.subr.bf16.mxu0 0
        %1376 = vmatpush1.bf16.msra.mxu0 0
        %1377 = vmatprep.subr.bf16.mxu0 0
        %1378 = vmatpush1.bf16.msra.mxu0 0
        %1379 = vmatprep.subr.bf16.mxu0 0
        %1380 = vmatpush1.bf16.msra.mxu0 0
        %1381 = vmatprep.subr.bf16.mxu0 0
        %1382 = vmatpush1.bf16.msra.mxu0 0
        %1383 = vmatprep.subr.bf16.mxu0 0
        %1384 = vmatpush1.bf16.msra.mxu0 0
        %1385 = vmatprep.subr.bf16.mxu0 0
        %1386 = vmatpush1.bf16.msra.mxu0 0
        %1387 = vmatprep.subr.bf16.mxu0 0
        %1388 = vmatpush1.bf16.msra.mxu0 0
        %1389 = vmatprep.subr.bf16.mxu0 0
        %1390 = vmatpush1.bf16.msra.mxu0 0
        %1391 = vmatprep.subr.bf16.mxu0 0
        %1392 = vmatpush1.bf16.msra.mxu0 0
        %1393 = vmatprep.subr.bf16.mxu0 0
        %1394 = vmatpush1.bf16.msra.mxu0 0
        %1395 = vmatprep.subr.bf16.mxu0 0
        %1396 = vmatpush1.bf16.msra.mxu0 0
        %1397 = vmatprep.mubr.bf16.mxu0 0
        %1398 = vmatmul.mubr.bf16.gmra.mrb[0].mxu0 %v1360
        %v1399 = vpop.f32.mrb[0].mxu0
        %v1400 = vadd.f32 %v1354, %v1399
        %v1401 = vpop.f32.mrb[0].mxu0
        %v1402 = vpop.f32.mrb[0].mxu0
        %v1403 = vpop.f32.mrb[0].mxu0
        %1404 = vdwg.mxu0
        %s1405 = scalar_lea.vmem %s1, 32
        %v1406 = vld [vmem:[%s1405] sm:$0xf]
        %v1407 = vld [vmem:[%s1405 + $0x4] sm:$0xf]
        %v1408 = vld [vmem:[%s1405 + $0x8] sm:$0xf]
        %v1409 = vld [vmem:[%s1405 + $0xc] sm:$0xf]
        %s1410 = scalar_lea.vmem %s5, 2
        %v1411 = vld [vmem:[%s1410] sm:$0x1]
        %v1413 = vlaneseq
        %v1414 = vshrl.u32 %v1413, 7
        %v1415 = vsub.s32 0, %v1414
        %v1416 = vrot.slane %v1411, %v1415
        %v1422 = vunpack.c.l.b16 %v1406
        %v1423 = vunpack.c.l.b16 %v1407
        %v1424 = vunpack.c.l.b16 %v1408
        %v1425 = vunpack.c.l.b16 %v1409
        %v1426 = vpack.c.b16 %v1423, %v1422
        %v1427 = vpack.c.b16 %v1425, %v1424
        %1430 = vmatprep.subr.bf16.mxu0 0
        %1431 = vmatpush1.bf16.msra.mxu0 %v1426
        %1432 = vmatprep.subr.bf16.mxu0 0
        %1433 = vmatpush1.bf16.msra.mxu0 %v1427
        %1434 = vmatprep.subr.bf16.mxu0 0
        %1435 = vmatpush1.bf16.msra.mxu0 0
        %1436 = vmatprep.subr.bf16.mxu0 0
        %1437 = vmatpush1.bf16.msra.mxu0 0
        %1438 = vmatprep.subr.bf16.mxu0 0
        %1439 = vmatpush1.bf16.msra.mxu0 0
        %1440 = vmatprep.subr.bf16.mxu0 0
        %1441 = vmatpush1.bf16.msra.mxu0 0
        %1442 = vmatprep.subr.bf16.mxu0 0
        %1443 = vmatpush1.bf16.msra.mxu0 0
        %1444 = vmatprep.subr.bf16.mxu0 0
        %1445 = vmatpush1.bf16.msra.mxu0 0
        %1446 = vmatprep.subr.bf16.mxu0 0
        %1447 = vmatpush1.bf16.msra.mxu0 0
        %1448 = vmatprep.subr.bf16.mxu0 0
        %1449 = vmatpush1.bf16.msra.mxu0 0
        %1450 = vmatprep.subr.bf16.mxu0 0
        %1451 = vmatpush1.bf16.msra.mxu0 0
        %1452 = vmatprep.subr.bf16.mxu0 0
        %1453 = vmatpush1.bf16.msra.mxu0 0
        %1454 = vmatprep.subr.bf16.mxu0 0
        %1455 = vmatpush1.bf16.msra.mxu0 0
        %1456 = vmatprep.subr.bf16.mxu0 0
        %1457 = vmatpush1.bf16.msra.mxu0 0
        %1458 = vmatprep.subr.bf16.mxu0 0
        %1459 = vmatpush1.bf16.msra.mxu0 0
        %1460 = vmatprep.subr.bf16.mxu0 0
        %1461 = vmatpush1.bf16.msra.mxu0 0
        %1462 = vmatprep.mubr.bf16.mxu0 0
        %1463 = vmatmul.mubr.bf16.gmra.mrb[0].mxu0 %v988
        %v1464 = vpop.f32.mrb[0].mxu0
        %v1465 = vadd.f32 %v1416, %v1464
        %v1466 = vpop.f32.mrb[0].mxu0
        %v1467 = vpop.f32.mrb[0].mxu0
        %v1468 = vpop.f32.mrb[0].mxu0
        %1469 = vdwg.mxu0
        %v1470 = vpack.c.bf16 %v1465, %v1465
        %s1471 = scalar_lea.vmem [#allocation2], 16
        %v1472 = vld [vmem:[%s1471] sm:$0xff]
        %v1474 = vsel %vm1032, %v1470, 0
        %v1477 = vsel %vm1032, %v1472, 0
        %1479 = vmatprep.subr.bf16.mxu0 0
        %1480 = vmatpush1.bf16.xpose.msra.mxu0 %v1477
        %1481 = vmatprep.subr.bf16.mxu0 0
        %1482 = vmatpush1.bf16.xpose.msra.mxu0 0
        %1483 = vmatprep.subr.bf16.mxu0 0
        %1484 = vmatpush1.bf16.xpose.msra.mxu0 0
        %1485 = vmatprep.subr.bf16.mxu0 0
        %1486 = vmatpush1.bf16.xpose.msra.mxu0 0
        %1487 = vmatprep.subr.bf16.mxu0 0
        %1488 = vmatpush1.bf16.xpose.msra.mxu0 0
        %1489 = vmatprep.subr.bf16.mxu0 0
        %1490 = vmatpush1.bf16.xpose.msra.mxu0 0
        %1491 = vmatprep.subr.bf16.mxu0 0
        %1492 = vmatpush1.bf16.xpose.msra.mxu0 0
        %1493 = vmatprep.subr.bf16.mxu0 0
        %1494 = vmatpush1.bf16.xpose.msra.mxu0 0
        %1495 = vmatprep.subr.bf16.mxu0 0
        %1496 = vmatpush1.bf16.xpose.msra.mxu0 0
        %1497 = vmatprep.subr.bf16.mxu0 0
        %1498 = vmatpush1.bf16.xpose.msra.mxu0 0
        %1499 = vmatprep.subr.bf16.mxu0 0
        %1500 = vmatpush1.bf16.xpose.msra.mxu0 0
        %1501 = vmatprep.subr.bf16.mxu0 0
        %1502 = vmatpush1.bf16.xpose.msra.mxu0 0
        %1503 = vmatprep.subr.bf16.mxu0 0
        %1504 = vmatpush1.bf16.xpose.msra.mxu0 0
        %1505 = vmatprep.subr.bf16.mxu0 0
        %1506 = vmatpush1.bf16.xpose.msra.mxu0 0
        %1507 = vmatprep.subr.bf16.mxu0 0
        %1508 = vmatpush1.bf16.xpose.msra.mxu0 0
        %1509 = vmatprep.subr.bf16.mxu0 0
        %1510 = vmatpush1.bf16.xpose.msra.mxu0 0
        %1511 = vmatprep.mubr.bf16.mxu0 0
        %1512 = vmatmul.mubr.bf16.gmra.mrb[0].mxu0 %v1474
        %v1513 = vpop.f32.mrb[0].mxu0
        %v1514 = vadd.f32 0.0, %v1513
        %v1515 = vpop.f32.mrb[0].mxu0
        %v1516 = vpop.f32.mrb[0].mxu0
        %v1517 = vpop.f32.mrb[0].mxu0
        %1518 = vdwg.mxu0
        %v1519 = vsel %vm1079, %v1514, -inf
        %1520 = vmax.xlane.f32.xlu0 %v1519
        %v1521 = vpop.xlane.xlu0 %1520
        %v1522 = vsub.f32 %v1514, %v1521
        %v1523 = vmul.f32 %v1522, 1.442695
        %v1524 = vpow.pop %v1523
        %v1525 = vsel %vm1079, %v1524, 0.0
        %1526 = vadd.xlane.f32.xlu0 %v1525
        %v1527 = vpop.xlane.xlu0 %1526
        %v1528 = vrcp.pop %v1527
        %v1529 = vmul.f32 %v1524, %v1528
        %v1530 = vpack.c.bf16 %v1529, %v1529
        %s1531 = scalar_lea.vmem [#allocation3], 16
        %v1532 = vld [vmem:[%s1531] sm:$0xff]
        %v1534 = vsel %vm1079, %v1530, 0
        %1536 = vmatprep.subr.bf16.mxu0 0
        %1537 = vmatpush1.bf16.msra.mxu0 %v1532
        %1538 = vmatprep.subr.bf16.mxu0 0
        %1539 = vmatpush1.bf16.msra.mxu0 0
        %1540 = vmatprep.subr.bf16.mxu0 0
        %1541 = vmatpush1.bf16.msra.mxu0 0
        %1542 = vmatprep.subr.bf16.mxu0 0
        %1543 = vmatpush1.bf16.msra.mxu0 0
        %1544 = vmatprep.subr.bf16.mxu0 0
        %1545 = vmatpush1.bf16.msra.mxu0 0
        %1546 = vmatprep.subr.bf16.mxu0 0
        %1547 = vmatpush1.bf16.msra.mxu0 0
        %1548 = vmatprep.subr.bf16.mxu0 0
        %1549 = vmatpush1.bf16.msra.mxu0 0
        %1550 = vmatprep.subr.bf16.mxu0 0
        %1551 = vmatpush1.bf16.msra.mxu0 0
        %1552 = vmatprep.subr.bf16.mxu0 0
        %1553 = vmatpush1.bf16.msra.mxu0 0
        %1554 = vmatprep.subr.bf16.mxu0 0
        %1555 = vmatpush1.bf16.msra.mxu0 0
        %1556 = vmatprep.subr.bf16.mxu0 0
        %1557 = vmatpush1.bf16.msra.mxu0 0
        %1558 = vmatprep.subr.bf16.mxu0 0
        %1559 = vmatpush1.bf16.msra.mxu0 0
        %1560 = vmatprep.subr.bf16.mxu0 0
        %1561 = vmatpush1.bf16.msra.mxu0 0
        %1562 = vmatprep.subr.bf16.mxu0 0
        %1563 = vmatpush1.bf16.msra.mxu0 0
        %1564 = vmatprep.subr.bf16.mxu0 0
        %1565 = vmatpush1.bf16.msra.mxu0 0
        %1566 = vmatprep.subr.bf16.mxu0 0
        %1567 = vmatpush1.bf16.msra.mxu0 0
        %1568 = vmatprep.mubr.bf16.mxu0 0
        %1569 = vmatmul.mubr.bf16.gmra.mrb[0].mxu0 %v1534
        %v1570 = vpop.f32.mrb[0].mxu0
        %v1571 = vadd.f32 0.0, %v1570
        %v1572 = vpop.f32.mrb[0].mxu0
        %v1573 = vpop.f32.mrb[0].mxu0
        %v1574 = vpop.f32.mrb[0].mxu0
        %1575 = vdwg.mxu0
        %v1576 = vpack.c.bf16 %v1571, %v1571
        %s1577 = scalar_lea.vmem %s2, 8
        %v1578 = vld [vmem:[%s1577] sm:$0xf]
        %v1580 = vsel %vm1032, %v1576, 0
        %v1583 = vsel %vm1315, %v1578, 0
        %1585 = vmatprep.subr.bf16.mxu0 0
        %1586 = vmatpush1.bf16.msra.mxu0 %v1583
        %1587 = vmatprep.subr.bf16.mxu0 0
        %1588 = vmatpush1.bf16.msra.mxu0 0
        %1589 = vmatprep.subr.bf16.mxu0 0
        %1590 = vmatpush1.bf16.msra.mxu0 0
        %1591 = vmatprep.subr.bf16.mxu0 0
        %1592 = vmatpush1.bf16.msra.mxu0 0
        %1593 = vmatprep.subr.bf16.mxu0 0
        %1594 = vmatpush1.bf16.msra.mxu0 0
        %1595 = vmatprep.subr.bf16.mxu0 0
        %1596 = vmatpush1.bf16.msra.mxu0 0
        %1597 = vmatprep.subr.bf16.mxu0 0
        %1598 = vmatpush1.bf16.msra.mxu0 0
        %1599 = vmatprep.subr.bf16.mxu0 0
        %1600 = vmatpush1.bf16.msra.mxu0 0
        %1601 = vmatprep.subr.bf16.mxu0 0
        %1602 = vmatpush1.bf16.msra.mxu0 0
        %1603 = vmatprep.subr.bf16.mxu0 0
        %1604 = vmatpush1.bf16.msra.mxu0 0
        %1605 = vmatprep.subr.bf16.mxu0 0
        %1606 = vmatpush1.bf16.msra.mxu0 0
        %1607 = vmatprep.subr.bf16.mxu0 0
        %1608 = vmatpush1.bf16.msra.mxu0 0
        %1609 = vmatprep.subr.bf16.mxu0 0
        %1610 = vmatpush1.bf16.msra.mxu0 0
        %1611 = vmatprep.subr.bf16.mxu0 0
        %1612 = vmatpush1.bf16.msra.mxu0 0
        %1613 = vmatprep.subr.bf16.mxu0 0
        %1614 = vmatpush1.bf16.msra.mxu0 0
        %1615 = vmatprep.subr.bf16.mxu0 0
        %1616 = vmatpush1.bf16.msra.mxu0 0
        %1617 = vmatprep.mubr.bf16.mxu0 0
        %1618 = vmatmul.mubr.bf16.gmra.mrb[0].mxu0 %v1580
        %v1619 = vpop.f32.mrb[0].mxu0
        %v1620 = vadd.f32 0.0, %v1619
        %v1621 = vpop.f32.mrb[0].mxu0
        %v1622 = vpop.f32.mrb[0].mxu0
        %v1623 = vpop.f32.mrb[0].mxu0
        %1624 = vdwg.mxu0
        %v1625 = vadd.f32 %v1400, %v1620
        %s1626 = scalar_lea.vmem %s1, 48
        %v1627 = vld [vmem:[%s1626] sm:$0xf]
        %v1628 = vld [vmem:[%s1626 + $0x4] sm:$0xf]
        %v1629 = vld [vmem:[%s1626 + $0x8] sm:$0xf]
        %v1630 = vld [vmem:[%s1626 + $0xc] sm:$0xf]
        %s1631 = scalar_lea.vmem %s5, 3
        %v1632 = vld [vmem:[%s1631] sm:$0x1]
        %v1634 = vlaneseq
        %v1635 = vshrl.u32 %v1634, 7
        %v1636 = vsub.s32 0, %v1635
        %v1637 = vrot.slane %v1632, %v1636
        %v1643 = vunpack.c.l.b16 %v1627
        %v1644 = vunpack.c.l.b16 %v1628
        %v1645 = vunpack.c.l.b16 %v1629
        %v1646 = vunpack.c.l.b16 %v1630
        %v1647 = vpack.c.b16 %v1644, %v1643
        %v1648 = vpack.c.b16 %v1646, %v1645
        %1651 = vmatprep.subr.bf16.mxu0 0
        %1652 = vmatpush1.bf16.msra.mxu0 %v1647
        %1653 = vmatprep.subr.bf16.mxu0 0
        %1654 = vmatpush1.bf16.msra.mxu0 %v1648
        %1655 = vmatprep.subr.bf16.mxu0 0
        %1656 = vmatpush1.bf16.msra.mxu0 0
        %1657 = vmatprep.subr.bf16.mxu0 0
        %1658 = vmatpush1.bf16.msra.mxu0 0
        %1659 = vmatprep.subr.bf16.mxu0 0
        %1660 = vmatpush1.bf16.msra.mxu0 0
        %1661 = vmatprep.subr.bf16.mxu0 0
        %1662 = vmatpush1.bf16.msra.mxu0 0
        %1663 = vmatprep.subr.bf16.mxu0 0
        %1664 = vmatpush1.bf16.msra.mxu0 0
        %1665 = vmatprep.subr.bf16.mxu0 0
        %1666 = vmatpush1.bf16.msra.mxu0 0
        %1667 = vmatprep.subr.bf16.mxu0 0
        %1668 = vmatpush1.bf16.msra.mxu0 0
        %1669 = vmatprep.subr.bf16.mxu0 0
        %1670 = vmatpush1.bf16.msra.mxu0 0
        %1671 = vmatprep.subr.bf16.mxu0 0
        %1672 = vmatpush1.bf16.msra.mxu0 0
        %1673 = vmatprep.subr.bf16.mxu0 0
        %1674 = vmatpush1.bf16.msra.mxu0 0
        %1675 = vmatprep.subr.bf16.mxu0 0
        %1676 = vmatpush1.bf16.msra.mxu0 0
        %1677 = vmatprep.subr.bf16.mxu0 0
        %1678 = vmatpush1.bf16.msra.mxu0 0
        %1679 = vmatprep.subr.bf16.mxu0 0
        %1680 = vmatpush1.bf16.msra.mxu0 0
        %1681 = vmatprep.subr.bf16.mxu0 0
        %1682 = vmatpush1.bf16.msra.mxu0 0
        %1683 = vmatprep.mubr.bf16.mxu0 0
        %1684 = vmatmul.mubr.bf16.gmra.mrb[0].mxu0 %v988
        %v1685 = vpop.f32.mrb[0].mxu0
        %v1686 = vadd.f32 %v1637, %v1685
        %v1687 = vpop.f32.mrb[0].mxu0
        %v1688 = vpop.f32.mrb[0].mxu0
        %v1689 = vpop.f32.mrb[0].mxu0
        %1690 = vdwg.mxu0
        %v1691 = vpack.c.bf16 %v1686, %v1686
        %s1692 = scalar_lea.vmem [#allocation2], 24
        %v1693 = vld [vmem:[%s1692] sm:$0xff]
        %v1695 = vsel %vm1032, %v1691, 0
        %v1698 = vsel %vm1032, %v1693, 0
        %1700 = vmatprep.subr.bf16.mxu0 0
        %1701 = vmatpush1.bf16.xpose.msra.mxu0 %v1698
        %1702 = vmatprep.subr.bf16.mxu0 0
        %1703 = vmatpush1.bf16.xpose.msra.mxu0 0
        %1704 = vmatprep.subr.bf16.mxu0 0
        %1705 = vmatpush1.bf16.xpose.msra.mxu0 0
        %1706 = vmatprep.subr.bf16.mxu0 0
        %1707 = vmatpush1.bf16.xpose.msra.mxu0 0
        %1708 = vmatprep.subr.bf16.mxu0 0
        %1709 = vmatpush1.bf16.xpose.msra.mxu0 0
        %1710 = vmatprep.subr.bf16.mxu0 0
        %1711 = vmatpush1.bf16.xpose.msra.mxu0 0
        %1712 = vmatprep.subr.bf16.mxu0 0
        %1713 = vmatpush1.bf16.xpose.msra.mxu0 0
        %1714 = vmatprep.subr.bf16.mxu0 0
        %1715 = vmatpush1.bf16.xpose.msra.mxu0 0
        %1716 = vmatprep.subr.bf16.mxu0 0
        %1717 = vmatpush1.bf16.xpose.msra.mxu0 0
        %1718 = vmatprep.subr.bf16.mxu0 0
        %1719 = vmatpush1.bf16.xpose.msra.mxu0 0
        %1720 = vmatprep.subr.bf16.mxu0 0
        %1721 = vmatpush1.bf16.xpose.msra.mxu0 0
        %1722 = vmatprep.subr.bf16.mxu0 0
        %1723 = vmatpush1.bf16.xpose.msra.mxu0 0
        %1724 = vmatprep.subr.bf16.mxu0 0
        %1725 = vmatpush1.bf16.xpose.msra.mxu0 0
        %1726 = vmatprep.subr.bf16.mxu0 0
        %1727 = vmatpush1.bf16.xpose.msra.mxu0 0
        %1728 = vmatprep.subr.bf16.mxu0 0
        %1729 = vmatpush1.bf16.xpose.msra.mxu0 0
        %1730 = vmatprep.subr.bf16.mxu0 0
        %1731 = vmatpush1.bf16.xpose.msra.mxu0 0
        %1732 = vmatprep.mubr.bf16.mxu0 0
        %1733 = vmatmul.mubr.bf16.gmra.mrb[0].mxu0 %v1695
        %v1734 = vpop.f32.mrb[0].mxu0
        %v1735 = vadd.f32 0.0, %v1734
        %v1736 = vpop.f32.mrb[0].mxu0
        %v1737 = vpop.f32.mrb[0].mxu0
        %v1738 = vpop.f32.mrb[0].mxu0
        %1739 = vdwg.mxu0
        %v1740 = vsel %vm1079, %v1735, -inf
        %1741 = vmax.xlane.f32.xlu0 %v1740
        %v1742 = vpop.xlane.xlu0 %1741
        %v1743 = vsub.f32 %v1735, %v1742
        %v1744 = vmul.f32 %v1743, 1.442695
        %v1745 = vpow.pop %v1744
        %v1746 = vsel %vm1079, %v1745, 0.0
        %1747 = vadd.xlane.f32.xlu0 %v1746
        %v1748 = vpop.xlane.xlu0 %1747
        %v1749 = vrcp.pop %v1748
        %v1750 = vmul.f32 %v1745, %v1749
        %v1751 = vpack.c.bf16 %v1750, %v1750
        %s1752 = scalar_lea.vmem [#allocation3], 24
        %v1753 = vld [vmem:[%s1752] sm:$0xff]
        %v1755 = vsel %vm1079, %v1751, 0
        %1757 = vmatprep.subr.bf16.mxu0 0
        %1758 = vmatpush1.bf16.msra.mxu0 %v1753
        %1759 = vmatprep.subr.bf16.mxu0 0
        %1760 = vmatpush1.bf16.msra.mxu0 0
        %1761 = vmatprep.subr.bf16.mxu0 0
        %1762 = vmatpush1.bf16.msra.mxu0 0
        %1763 = vmatprep.subr.bf16.mxu0 0
        %1764 = vmatpush1.bf16.msra.mxu0 0
        %1765 = vmatprep.subr.bf16.mxu0 0
        %1766 = vmatpush1.bf16.msra.mxu0 0
        %1767 = vmatprep.subr.bf16.mxu0 0
        %1768 = vmatpush1.bf16.msra.mxu0 0
        %1769 = vmatprep.subr.bf16.mxu0 0
        %1770 = vmatpush1.bf16.msra.mxu0 0
        %1771 = vmatprep.subr.bf16.mxu0 0
        %1772 = vmatpush1.bf16.msra.mxu0 0
        %1773 = vmatprep.subr.bf16.mxu0 0
        %1774 = vmatpush1.bf16.msra.mxu0 0
        %1775 = vmatprep.subr.bf16.mxu0 0
        %1776 = vmatpush1.bf16.msra.mxu0 0
        %1777 = vmatprep.subr.bf16.mxu0 0
        %1778 = vmatpush1.bf16.msra.mxu0 0
        %1779 = vmatprep.subr.bf16.mxu0 0
        %1780 = vmatpush1.bf16.msra.mxu0 0
        %1781 = vmatprep.subr.bf16.mxu0 0
        %1782 = vmatpush1.bf16.msra.mxu0 0
        %1783 = vmatprep.subr.bf16.mxu0 0
        %1784 = vmatpush1.bf16.msra.mxu0 0
        %1785 = vmatprep.subr.bf16.mxu0 0
        %1786 = vmatpush1.bf16.msra.mxu0 0
        %1787 = vmatprep.subr.bf16.mxu0 0
        %1788 = vmatpush1.bf16.msra.mxu0 0
        %1789 = vmatprep.mubr.bf16.mxu0 0
        %1790 = vmatmul.mubr.bf16.gmra.mrb[0].mxu0 %v1755
        %v1791 = vpop.f32.mrb[0].mxu0
        %v1792 = vadd.f32 0.0, %v1791
        %v1793 = vpop.f32.mrb[0].mxu0
        %v1794 = vpop.f32.mrb[0].mxu0
        %v1795 = vpop.f32.mrb[0].mxu0
        %1796 = vdwg.mxu0
        %v1797 = vpack.c.bf16 %v1792, %v1792
        %s1798 = scalar_lea.vmem %s2, 12
        %v1799 = vld [vmem:[%s1798] sm:$0xf]
        %v1801 = vsel %vm1032, %v1797, 0
        %v1804 = vsel %vm1315, %v1799, 0
        %1806 = vmatprep.subr.bf16.mxu0 0
        %1807 = vmatpush1.bf16.msra.mxu0 %v1804
        %1808 = vmatprep.subr.bf16.mxu0 0
        %1809 = vmatpush1.bf16.msra.mxu0 0
        %1810 = vmatprep.subr.bf16.mxu0 0
        %1811 = vmatpush1.bf16.msra.mxu0 0
        %1812 = vmatprep.subr.bf16.mxu0 0
        %1813 = vmatpush1.bf16.msra.mxu0 0
        %1814 = vmatprep.subr.bf16.mxu0 0
        %1815 = vmatpush1.bf16.msra.mxu0 0
        %1816 = vmatprep.subr.bf16.mxu0 0
        %1817 = vmatpush1.bf16.msra.mxu0 0
        %1818 = vmatprep.subr.bf16.mxu0 0
        %1819 = vmatpush1.bf16.msra.mxu0 0
        %1820 = vmatprep.subr.bf16.mxu0 0
        %1821 = vmatpush1.bf16.msra.mxu0 0
        %1822 = vmatprep.subr.bf16.mxu0 0
        %1823 = vmatpush1.bf16.msra.mxu0 0
        %1824 = vmatprep.subr.bf16.mxu0 0
        %1825 = vmatpush1.bf16.msra.mxu0 0
        %1826 = vmatprep.subr.bf16.mxu0 0
        %1827 = vmatpush1.bf16.msra.mxu0 0
        %1828 = vmatprep.subr.bf16.mxu0 0
        %1829 = vmatpush1.bf16.msra.mxu0 0
        %1830 = vmatprep.subr.bf16.mxu0 0
        %1831 = vmatpush1.bf16.msra.mxu0 0
        %1832 = vmatprep.subr.bf16.mxu0 0
        %1833 = vmatpush1.bf16.msra.mxu0 0
        %1834 = vmatprep.subr.bf16.mxu0 0
        %1835 = vmatpush1.bf16.msra.mxu0 0
        %1836 = vmatprep.subr.bf16.mxu0 0
        %1837 = vmatpush1.bf16.msra.mxu0 0
        %1838 = vmatprep.mubr.bf16.mxu0 0
        %1839 = vmatmul.mubr.bf16.gmra.mrb[0].mxu0 %v1801
        %v1840 = vpop.f32.mrb[0].mxu0
        %v1841 = vadd.f32 0.0, %v1840
        %v1842 = vpop.f32.mrb[0].mxu0
        %v1843 = vpop.f32.mrb[0].mxu0
        %v1844 = vpop.f32.mrb[0].mxu0
        %1845 = vdwg.mxu0
        %v1846 = vadd.f32 %v1625, %v1841
        %v1847 = vlaneseq
        %v1848 = vshrl.u32 %v1847, 7
        %v1849 = vsub.s32 0, %v1848
        %v1850 = vrot.slane %v323, %v1849
        %v1851 = vadd.f32 %v1846, %v1850
        %v1852 = vadd.f32 %v934, %v1851
        %v1853 = vsel %vm935, %v1852, 0.0
        %1854 = vadd.xlane.f32.xlu0 %v1853
        %v1855 = vpop.xlane.xlu0 %1854
        %v1856 = vmul.f32 %v1855, %v939
        %v1857 = vmul.f32 %v1852, %v1852
        %v1858 = vsel %vm935, %v1857, 0.0
        %1859 = vadd.xlane.f32.xlu0 %v1858
        %v1860 = vpop.xlane.xlu0 %1859
        %v1861 = vmul.f32 %v1860, %v939
        %v1862 = vmul.f32 %v1856, %v1856
        %v1863 = vsub.f32 %v1861, %v1862
        %v1864 = vmax.f32 %v1863, 0.0
        %v1865 = vsub.f32 %v1852, %v1856
        %v1866 = vadd.f32 %v1864, 1e-06
        %v1867 = vrsqrt.pop %v1866
        %v1868 = vmul.f32 %v1865, %v1867
        %v1869 = vlaneseq
        %v1870 = vshrl.u32 %v1869, 7
        %v1871 = vsub.s32 0, %v1870
        %v1872 = vrot.slane %v321, %v1871
        %v1873 = vmul.f32 %v1868, %v1872
        %v1874 = vlaneseq
        %v1875 = vshrl.u32 %v1874, 7
        %v1876 = vsub.s32 0, %v1875
        %v1877 = vrot.slane %v322, %v1876
        %v1878 = vadd.f32 %v1873, %v1877
        %v1879 = vpack.c.bf16 %v1878, %v1878
        %v1880 = vld [vmem:[%s3] sm:$0xf]
        %v1881 = vld [vmem:[%s3 + $0x4] sm:$0xf]
        %v1882 = vld [vmem:[%s3 + $0x8] sm:$0xf]
        %v1883 = vld [vmem:[%s3 + $0xc] sm:$0xf]
        %v1884 = vld [vmem:[%s6] sm:$0x1]
        %v1886 = vlaneseq
        %v1887 = vshrl.u32 %v1886, 7
        %v1888 = vsub.s32 0, %v1887
        %v1889 = vrot.slane %v1884, %v1888
        %v1895 = vunpack.c.l.b16 %v1880
        %v1896 = vunpack.c.l.b16 %v1881
        %v1897 = vunpack.c.l.b16 %v1882
        %v1898 = vunpack.c.l.b16 %v1883
        %v1899 = vpack.c.b16 %v1896, %v1895
        %v1900 = vpack.c.b16 %v1898, %v1897
        %v1904 = vsel %vm935, %v1879, 0
        %1906 = vmatprep.subr.bf16.mxu0 0
        %1907 = vmatpush1.bf16.msra.mxu0 %v1899
        %1908 = vmatprep.subr.bf16.mxu0 0
        %1909 = vmatpush1.bf16.msra.mxu0 %v1900
        %1910 = vmatprep.subr.bf16.mxu0 0
        %1911 = vmatpush1.bf16.msra.mxu0 0
        %1912 = vmatprep.subr.bf16.mxu0 0
        %1913 = vmatpush1.bf16.msra.mxu0 0
        %1914 = vmatprep.subr.bf16.mxu0 0
        %1915 = vmatpush1.bf16.msra.mxu0 0
        %1916 = vmatprep.subr.bf16.mxu0 0
        %1917 = vmatpush1.bf16.msra.mxu0 0
        %1918 = vmatprep.subr.bf16.mxu0 0
        %1919 = vmatpush1.bf16.msra.mxu0 0
        %1920 = vmatprep.subr.bf16.mxu0 0
        %1921 = vmatpush1.bf16.msra.mxu0 0
        %1922 = vmatprep.subr.bf16.mxu0 0
        %1923 = vmatpush1.bf16.msra.mxu0 0
        %1924 = vmatprep.subr.bf16.mxu0 0
        %1925 = vmatpush1.bf16.msra.mxu0 0
        %1926 = vmatprep.subr.bf16.mxu0 0
        %1927 = vmatpush1.bf16.msra.mxu0 0
        %1928 = vmatprep.subr.bf16.mxu0 0
        %1929 = vmatpush1.bf16.msra.mxu0 0
        %1930 = vmatprep.subr.bf16.mxu0 0
        %1931 = vmatpush1.bf16.msra.mxu0 0
        %1932 = vmatprep.subr.bf16.mxu0 0
        %1933 = vmatpush1.bf16.msra.mxu0 0
        %1934 = vmatprep.subr.bf16.mxu0 0
        %1935 = vmatpush1.bf16.msra.mxu0 0
        %1936 = vmatprep.subr.bf16.mxu0 0
        %1937 = vmatpush1.bf16.msra.mxu0 0
        %1938 = vmatprep.mubr.bf16.mxu0 0
        %1939 = vmatmul.mubr.bf16.gmra.mrb[0].mxu0 %v1904
        %v1940 = vpop.f32.mrb[0].mxu0
        %v1941 = vadd.f32 %v1889, %v1940
        %v1942 = vpop.f32.mrb[0].mxu0
        %v1943 = vpop.f32.mrb[0].mxu0
        %v1944 = vpop.f32.mrb[0].mxu0
        %1945 = vdwg.mxu0
        %v1946 = vmul.f32 %v1941, 0.5
        %v1947 = vmul.f32 %v1941, 0.044715
        %v1948 = vmul.f32 %v1947, %v1941
        %v1949 = vmul.f32 %v1948, %v1941
        %v1950 = vadd.f32 %v1941, %v1949
        %v1951 = vmul.f32 %v1950, 0.7978846
        %v1952 = vtanh.pop %v1951
        %v1953 = vadd.f32 %v1952, 1.0
        %v1954 = vmul.f32 %v1946, %v1953
        %v1955 = vpack.c.bf16 %v1954, %v1954
        %v1956 = vld [vmem:[%s4] sm:$0xf]
        %v1957 = vld [vmem:[%s4 + $0x4] sm:$0xf]
        %v1958 = vld [vmem:[%s4 + $0x8] sm:$0xf]
        %v1959 = vld [vmem:[%s4 + $0xc] sm:$0xf]
        %v1960 = vld [vmem:[%s4 + $0x10] sm:$0xf]
        %v1961 = vld [vmem:[%s4 + $0x14] sm:$0xf]
        %v1962 = vld [vmem:[%s4 + $0x18] sm:$0xf]
        %v1963 = vld [vmem:[%s4 + $0x1c] sm:$0xf]
        %v1964 = vlaneseq
        %v1965 = vshrl.u32 %v1964, 7
        %v1966 = vsub.s32 0, %v1965
        %v1967 = vrot.slane %v324, %v1966
        %v1976 = vunpack.c.l.b16 %v1956
        %v1977 = vunpack.c.l.b16 %v1957
        %v1978 = vunpack.c.l.b16 %v1958
        %v1979 = vunpack.c.l.b16 %v1959
        %v1980 = vunpack.c.l.b16 %v1960
        %v1981 = vunpack.c.l.b16 %v1961
        %v1982 = vunpack.c.l.b16 %v1962
        %v1983 = vunpack.c.l.b16 %v1963
        %v1984 = vpack.c.b16 %v1977, %v1976
        %v1985 = vpack.c.b16 %v1979, %v1978
        %v1986 = vpack.c.b16 %v1981, %v1980
        %v1987 = vpack.c.b16 %v1983, %v1982
        %vm1992 = vcmask 523264
        %v1994 = vsel %vm1992, %v1955, 0
        %1996 = vmatprep.subr.bf16.mxu0 0
        %1997 = vmatpush1.bf16.msra.mxu0 %v1984
        %1998 = vmatprep.subr.bf16.mxu0 0
        %1999 = vmatpush1.bf16.msra.mxu0 %v1985
        %2000 = vmatprep.subr.bf16.mxu0 0
        %2001 = vmatpush1.bf16.msra.mxu0 %v1986
        %2002 = vmatprep.subr.bf16.mxu0 0
        %2003 = vmatpush1.bf16.msra.mxu0 %v1987
        %2004 = vmatprep.subr.bf16.mxu0 0
        %2005 = vmatpush1.bf16.msra.mxu0 0
        %2006 = vmatprep.subr.bf16.mxu0 0
        %2007 = vmatpush1.bf16.msra.mxu0 0
        %2008 = vmatprep.subr.bf16.mxu0 0
        %2009 = vmatpush1.bf16.msra.mxu0 0
        %2010 = vmatprep.subr.bf16.mxu0 0
        %2011 = vmatpush1.bf16.msra.mxu0 0
        %2012 = vmatprep.subr.bf16.mxu0 0
        %2013 = vmatpush1.bf16.msra.mxu0 0
        %2014 = vmatprep.subr.bf16.mxu0 0
        %2015 = vmatpush1.bf16.msra.mxu0 0
        %2016 = vmatprep.subr.bf16.mxu0 0
        %2017 = vmatpush1.bf16.msra.mxu0 0
        %2018 = vmatprep.subr.bf16.mxu0 0
        %2019 = vmatpush1.bf16.msra.mxu0 0
        %2020 = vmatprep.subr.bf16.mxu0 0
        %2021 = vmatpush1.bf16.msra.mxu0 0
        %2022 = vmatprep.subr.bf16.mxu0 0
        %2023 = vmatpush1.bf16.msra.mxu0 0
        %2024 = vmatprep.subr.bf16.mxu0 0
        %2025 = vmatpush1.bf16.msra.mxu0 0
        %2026 = vmatprep.subr.bf16.mxu0 0
        %2027 = vmatpush1.bf16.msra.mxu0 0
        %2028 = vmatprep.mubr.bf16.mxu0 0
        %2029 = vmatmul.mubr.bf16.gmra.mrb[0].mxu0 %v1994
        %v2030 = vpop.f32.mrb[0].mxu0
        %v2031 = vadd.f32 %v1967, %v2030
        %v2032 = vpop.f32.mrb[0].mxu0
        %v2033 = vpop.f32.mrb[0].mxu0
        %v2034 = vpop.f32.mrb[0].mxu0
        %2035 = vdwg.mxu0
        %v2036 = vadd.f32 %v1852, %v2031
        %2037 = vst.msk [vmem:[%s312] sm:$0xff] %vm935, %v2036
        %s2038 = sand.u32 %s217, 1
        %s2039 = scalar_lea.sflag [#allocation5], %s2038
        %s2040 = sand.u32 %s217, 1
        %s2041 = smul.addr %s2040, 8
        %s2042 = scalar_lea.vmem [#allocation4], %s2041
        // Predicated region
        $region57: #{tpu_custom_call.1} parent=51 // pred_check
          %p2043 = pneg %p227
        $region58: #{tpu_custom_call.1} parent=51 // pred_check_branch
          %2045 = sbr.rel (%p2043) target = $region60
        $region59: #{tpu_custom_call.1} parent=51 // pred_region
          %s2047 = ssub.s32 128, 128
          %2048 = vsyncadd %s2039, %s2047
          %s2049 = smul.addr %s26, 2
          %s2050 = sadd.s32 %s27, %s2049
          %s2051 = smul.addr %s2050, 128
          %s2052 = scalar_lea.hbm %s8, %s2051
          %s2054 = sshll.u32 %s2042, 4
          %s2055 = int_to_ptr.vmem [resolvable:$true] %s2054
          %2057 = dma.vmem_to_hbm [thread:$0]  %s2055, 128, %s2052, %s2039
        $region60: #{tpu_custom_call.1} parent=51 // pred_fallthru
          _
      $region52: #{tpu_custom_call.1} parent=5 // pred_fallthru
        _
      %p2058 = scmp.le.s32.totalorder 2, %s17
      // Predicated region
      $region61: #{tpu_custom_call.1} parent=5 // pred_check
        %p2059 = pneg %p2058
      $region62: #{tpu_custom_call.1} parent=5 // pred_check_branch
        %2061 = sbr.rel (%p2059) target = $region64
      $region63: #{tpu_custom_call.1} parent=5 // pred_region
        %s2062 = ssub.s32 %s17, 2
        // Predicated region
        $region65: #{tpu_custom_call.1} parent=63 // pred_check
          %p2063 = pneg %p233
        $region66: #{tpu_custom_call.1} parent=63 // pred_check_branch
          %2065 = sbr.rel (%p2063) target = $region68
        $region67: #{tpu_custom_call.1} parent=63 // pred_region
          %s2066 = sand.u32 %s218, 1
          %s2067 = scalar_lea.sflag [#allocation5], %s2066
          %s2068 = sand.u32 %s218, 1
          %s2069 = smul.addr %s2068, 8
          %s2070 = scalar_lea.vmem [#allocation4], %s2069
          %2071 = dma.done %s2067, 128
        $region68: #{tpu_custom_call.1} parent=63 // pred_fallthru
          _
      $region64: #{tpu_custom_call.1} parent=5 // pred_fallthru
        _
    $region6: #{tpu_custom_call.1} parent=1 // loop_footer
      %s21 = sadd.s32 1, %s17
    $region7: #{tpu_custom_call.1} parent=1 // loop_footer_branch
      %16 = sbr.rel target = $region3
    $region8: #{tpu_custom_call.1} parent=1 // loop_exit
      _
    %2072 = vsyncpa [#allocation5], 1
    %s2073 = scalar_lea.sflag [#allocation5], 1
    %2074 = vsyncpa %s2073, 1

</llo_original>
